<compile_context>
chip_gen: v7x
topology: tpu7x:2x2x1
jax: 0.10.0
libtpu: 0.0.40
codegen_flags: <defaults>
</compile_context>

<pallas_src>
import jax
import jax.numpy as jnp
from jax import lax
from jax.experimental import pallas as pl
from jax.experimental.pallas import tpu as pltpu

FEATURE_DIM = 32
NUM_CLASSES = 10
HIDDEN1 = 150
HIDDEN2 = 50
LN_EPS = 1e-12          # HF ConvNextConfig.layer_norm_eps default
LEAKY_SLOPE = 0.01      # nn.LeakyReLU default negative_slope

# Lane-padded head widths (multiples of 128). Padding is exact zeros end-to-end
# because LeakyReLU(0) == 0, so the valid columns are bit-identical.
HIDDEN1_PAD = 256
HIDDEN2_PAD = 128
NUM_CLASSES_PAD = 128


def _leaky_relu(x):
    return jnp.where(x >= 0, x, LEAKY_SLOPE * x)


def _round_up(n, m):
    return ((n + m - 1) // m) * m


def _pad_to(a, shape):
    pads = [(0, t - s) for s, t in zip(a.shape, shape)]
    if any(p[1] for p in pads):
        return jnp.pad(a, pads)
    return a


def _pick_batch_tile(B, C, S, itemsize, target_bytes=4 << 20):
    """Batch tile sized so one x buffer is ~4 MiB (safe for v7x 64 MiB VMEM too)."""
    tb = target_bytes // max(1, C * S * itemsize)
    tb = max(8, min(512, (tb // 8) * 8))
    return min(tb, _round_up(B, 8))


def convnext_cls_head_kernel(
    x_ref,        # [TB, C, S]   last_hidden_state tile (channels on sublanes, spatial on lanes)
    gamma_ref,    # [1, C]       pooler LayerNorm weight
    beta_ref,     # [1, C]       pooler LayerNorm bias
    w1_ref,       # [C, 256]     (cols >=150 are zero)
    b1_ref,       # [1, 256]
    w2_ref,       # [256, 128]   (rows >=150 / cols >=50 are zero)
    b2_ref,       # [1, 128]
    w3_ref,       # [128, 128]   (rows >=50 / cols >=num_classes are zero)
    b3_ref,       # [1, 128]
    out_ref,      # [TB, 128]    lane-dense logits tile
):
    # Upcast first so bf16 feature maps still accumulate pooling/LN stats in f32.
    x = x_ref[...].astype(jnp.float32)                   # [TB, C, S]

    # --- ConvNext pooler: global average pool over spatial (lane axis), LayerNorm(C) ---
    pooled = jnp.mean(x, axis=-1)                        # [TB, C]
    mu = jnp.mean(pooled, axis=-1, keepdims=True)        # [TB, 1]
    diff = pooled - mu
    var = jnp.mean(diff * diff, axis=-1, keepdims=True)
    cls_token = diff * lax.rsqrt(var + LN_EPS) * gamma_ref[...] + beta_ref[...]   # [TB, C]

    # --- Classification head (Flatten is a no-op on [TB, C]; Dropout = identity, eval) ---
    h1 = jnp.dot(cls_token, w1_ref[...], preferred_element_type=jnp.float32) + b1_ref[...]
    h1 = _leaky_relu(h1)
    h2 = jnp.dot(h1, w2_ref[...], preferred_element_type=jnp.float32) + b2_ref[...]
    h2 = _leaky_relu(h2)
    out = jnp.dot(h2, w3_ref[...], preferred_element_type=jnp.float32) + b3_ref[...]

    out_ref[...] = out.astype(out_ref.dtype)


def convnext_cls_head(x_nchw, params, *, batch_tile=None):
    """x_nchw: [B, C, H, W] last_hidden_state of the ConvNeXt backbone (f32 or bf16)."""
    B, C, H, W = x_nchw.shape
    S = H * W
    # Free reshape of NCHW -> [B, C, S]; NO transpose (kernel reduces the lane axis).
    x = x_nchw.reshape(B, C, S)

    # Zero-pad head parameters to lane multiples at trace time.
    gamma = params["ln_gamma"]
    beta = params["ln_beta"]
    w1 = _pad_to(params["w1"], (C, HIDDEN1_PAD))
    b1 = _pad_to(params["b1"], (1, HIDDEN1_PAD))
    w2 = _pad_to(params["w2"], (HIDDEN1_PAD, HIDDEN2_PAD))
    b2 = _pad_to(params["b2"], (1, HIDDEN2_PAD))
    w3 = _pad_to(params["w3"], (HIDDEN2_PAD, NUM_CLASSES_PAD))
    b3 = _pad_to(params["b3"], (1, NUM_CLASSES_PAD))

    itemsize = jnp.dtype(x.dtype).itemsize
    tb = batch_tile if batch_tile is not None else _pick_batch_tile(B, C, S, itemsize)
    tb = min(tb, _round_up(B, 8))
    b_pad = _round_up(B, tb)
    if b_pad != B:
        x = jnp.pad(x, ((0, b_pad - B), (0, 0), (0, 0)))   # zero rows -> finite, sliced away

    grid = (b_pad // tb,)

    # x / out advance with the grid index; weights use constant index_maps so they are
    # DMA'd once and stay resident in VMEM across all grid steps.
    x_spec = pl.BlockSpec((tb, C, S), lambda b: (b, 0, 0))
    wspec = lambda shape: pl.BlockSpec(shape, lambda b: (0, 0))
    in_specs = [
        x_spec,
        wspec(gamma.shape), wspec(beta.shape),
        wspec(w1.shape), wspec(b1.shape),
        wspec(w2.shape), wspec(b2.shape),
        wspec(w3.shape), wspec(b3.shape),
    ]
    out_spec = pl.BlockSpec((tb, NUM_CLASSES_PAD), lambda b: (b, 0))

    weight_bytes = sum(int(a.size) * jnp.dtype(a.dtype).itemsize
                       for a in (gamma, beta, w1, b1, w2, b2, w3, b3))
    x_tile_bytes = tb * C * S * itemsize
    out_tile_bytes = tb * NUM_CLASSES_PAD * 4
    vmem_limit = 2 * (x_tile_bytes + out_tile_bytes) + 2 * weight_bytes + (4 << 20)
    vmem_limit = int(min(max(vmem_limit, 16 << 20), 64 << 20))

    cost = pl.CostEstimate(
        flops=int(b_pad * (C * S + 2 * (C * HIDDEN1_PAD
                                        + HIDDEN1_PAD * HIDDEN2_PAD
                                        + HIDDEN2_PAD * NUM_CLASSES_PAD))),
        transcendentals=int(b_pad),
        bytes_accessed=int(b_pad * C * S * itemsize + weight_bytes
                           + b_pad * NUM_CLASSES_PAD * 4),
    )

    out_padded = pl.pallas_call(
        convnext_cls_head_kernel,
        out_shape=jax.ShapeDtypeStruct((b_pad, NUM_CLASSES_PAD), jnp.float32),
        grid=grid,
        in_specs=in_specs,
        out_specs=out_spec,
        compiler_params=pltpu.CompilerParams(
            dimension_semantics=("parallel",),
            vmem_limit_bytes=vmem_limit,
        ),
        cost_estimate=cost,
    )(x, gamma, beta, w1, b1, w2, b2, w3, b3)

    return out_padded[:B, :NUM_CLASSES]


def init_params(key):
    ks = jax.random.split(key, 3)

    def lin(kw, fan_in, fan_out):
        bound = 1.0 / jnp.sqrt(fan_in)
        kw1, kw2 = jax.random.split(kw)
        w = jax.random.uniform(kw1, (fan_in, fan_out), jnp.float32, -bound, bound)
        b = jax.random.uniform(kw2, (1, fan_out), jnp.float32, -bound, bound)
        return w, b

    w1, b1 = lin(ks[0], FEATURE_DIM, HIDDEN1)
    w2, b2 = lin(ks[1], HIDDEN1, HIDDEN2)
    w3, b3 = lin(ks[2], HIDDEN2, NUM_CLASSES)
    return {
        "ln_gamma": jnp.ones((1, FEATURE_DIM), jnp.float32),
        "ln_beta": jnp.zeros((1, FEATURE_DIM), jnp.float32),
        "w1": w1, "b1": b1,
        "w2": w2, "b2": b2,
        "w3": w3, "b3": b3,
    }


def reference_forward(x_nchw, p):
    pooled = jnp.mean(x_nchw, axis=(-2, -1))                       # [B, C]
    mu = jnp.mean(pooled, axis=-1, keepdims=True)
    var = jnp.mean((pooled - mu) ** 2, axis=-1, keepdims=True)
    cls_token = (pooled - mu) / jnp.sqrt(var + LN_EPS) * p["ln_gamma"] + p["ln_beta"]
    h1 = _leaky_relu(cls_token @ p["w1"] + p["b1"])
    h2 = _leaky_relu(h1 @ p["w2"] + p["b2"])
    return h2 @ p["w3"] + p["b3"]


if __name__ == "__main__":
    key = jax.random.PRNGKey(0)
    k_x, k_p = jax.random.split(key)

    B, H, W = 16, 4, 4
    # Synthetic ConvNeXt last_hidden_state (NCHW), deterministic.
    x = jax.random.normal(k_x, (B, FEATURE_DIM, H, W), jnp.float32)
    params = init_params(k_p)

    # batch_tile=8 -> grid of 2 steps: exercises the pipelined x stream and the
    # resident (constant-index_map) weights.
    out = convnext_cls_head(x, params, batch_tile=8)
    out = jax.block_until_ready(out)

    ref = reference_forward(x, params)
    assert out.shape == (B, NUM_CLASSES)
    assert jnp.allclose(out, ref, atol=1e-5, rtol=1e-5), (
        f"max abs err {jnp.max(jnp.abs(out - ref))}")

    print("KERNEL_OK")
</pallas_src>

<mosaic_0001>
module attributes {stable_mosaic.version = 11 : i64} {
  func.func @convnext_cls_head_kernel(%arg0: i32, %arg1: memref<8x32x16xf32, #tpu.memory_space<vmem>>, %arg2: memref<1x32xf32, #tpu.memory_space<vmem>>, %arg3: memref<1x32xf32, #tpu.memory_space<vmem>>, %arg4: memref<32x256xf32, #tpu.memory_space<vmem>>, %arg5: memref<1x256xf32, #tpu.memory_space<vmem>>, %arg6: memref<256x128xf32, #tpu.memory_space<vmem>>, %arg7: memref<1x128xf32, #tpu.memory_space<vmem>>, %arg8: memref<128x128xf32, #tpu.memory_space<vmem>>, %arg9: memref<1x128xf32, #tpu.memory_space<vmem>>, %arg10: memref<8x128xf32, #tpu.memory_space<vmem>>) attributes {dimension_semantics = [#tpu.dimension_semantics<parallel>], iteration_bounds = array<i64: 2>, scalar_prefetch = 0 : i64, scratch_operands = 0 : i64, tpu.core_type = #tpu.core_type<tc>, window_params = [{transform_indices = @transform_0, window_bounds = array<i64: 8, 32, 16>}, {pipeline_mode = #tpu.pipeline_mode<synchronous>, transform_indices = @transform_1, window_bounds = array<i64: 1, 32>}, {pipeline_mode = #tpu.pipeline_mode<synchronous>, transform_indices = @transform_2, window_bounds = array<i64: 1, 32>}, {pipeline_mode = #tpu.pipeline_mode<synchronous>, transform_indices = @transform_3, window_bounds = array<i64: 32, 256>}, {pipeline_mode = #tpu.pipeline_mode<synchronous>, transform_indices = @transform_4, window_bounds = array<i64: 1, 256>}, {pipeline_mode = #tpu.pipeline_mode<synchronous>, transform_indices = @transform_5, window_bounds = array<i64: 256, 128>}, {pipeline_mode = #tpu.pipeline_mode<synchronous>, transform_indices = @transform_6, window_bounds = array<i64: 1, 128>}, {pipeline_mode = #tpu.pipeline_mode<synchronous>, transform_indices = @transform_7, window_bounds = array<i64: 128, 128>}, {pipeline_mode = #tpu.pipeline_mode<synchronous>, transform_indices = @transform_8, window_bounds = array<i64: 1, 128>}, {transform_indices = @transform_9, window_bounds = array<i64: 8, 128>}]} {
    %c0 = arith.constant 0 : index
    %c0_0 = arith.constant 0 : index
    %c0_1 = arith.constant 0 : index
    %0 = vector.load %arg1[%c0, %c0_0, %c0_1] : memref<8x32x16xf32, #tpu.memory_space<vmem>>, vector<8x32x16xf32>
    %cst = arith.constant dense<0.000000e+00> : vector<8x32xf32>
    %1 = vector.multi_reduction <add>, %0, %cst [2] : vector<8x32x16xf32> to vector<8x32xf32>
    %cst_2 = arith.constant 1.600000e+01 : f32
    %2 = vector.broadcast %cst_2 : f32 to vector<8x32xf32>
    %3 = arith.divf %1, %2 : vector<8x32xf32>
    %cst_3 = arith.constant dense<0.000000e+00> : vector<8xf32>
    %4 = vector.multi_reduction <add>, %3, %cst_3 [1] : vector<8x32xf32> to vector<8xf32>
    %5 = vector.shape_cast %4 : vector<8xf32> to vector<8x1xf32>
    %cst_4 = arith.constant 3.200000e+01 : f32
    %6 = vector.broadcast %cst_4 : f32 to vector<8x1xf32>
    %7 = arith.divf %5, %6 : vector<8x1xf32>
    %8 = vector.broadcast %7 : vector<8x1xf32> to vector<8x32xf32>
    %9 = arith.subf %3, %8 : vector<8x32xf32>
    %10 = arith.mulf %9, %9 : vector<8x32xf32>
    %cst_5 = arith.constant dense<0.000000e+00> : vector<8xf32>
    %11 = vector.multi_reduction <add>, %10, %cst_5 [1] : vector<8x32xf32> to vector<8xf32>
    %12 = vector.shape_cast %11 : vector<8xf32> to vector<8x1xf32>
    %cst_6 = arith.constant 3.200000e+01 : f32
    %13 = vector.broadcast %cst_6 : f32 to vector<8x1xf32>
    %14 = arith.divf %12, %13 : vector<8x1xf32>
    %cst_7 = arith.constant 9.99999996E-13 : f32
    %15 = vector.broadcast %cst_7 : f32 to vector<8x1xf32>
    %16 = arith.addf %14, %15 : vector<8x1xf32>
    %17 = math.rsqrt %16 : vector<8x1xf32>
    %18 = vector.broadcast %17 : vector<8x1xf32> to vector<8x32xf32>
    %19 = arith.mulf %9, %18 : vector<8x32xf32>
    %c0_8 = arith.constant 0 : index
    %c0_9 = arith.constant 0 : index
    %20 = vector.load %arg2[%c0_8, %c0_9] : memref<1x32xf32, #tpu.memory_space<vmem>>, vector<1x32xf32>
    %21 = vector.broadcast %20 : vector<1x32xf32> to vector<8x32xf32>
    %22 = arith.mulf %19, %21 : vector<8x32xf32>
    %c0_10 = arith.constant 0 : index
    %c0_11 = arith.constant 0 : index
    %23 = vector.load %arg3[%c0_10, %c0_11] : memref<1x32xf32, #tpu.memory_space<vmem>>, vector<1x32xf32>
    %24 = vector.broadcast %23 : vector<1x32xf32> to vector<8x32xf32>
    %25 = arith.addf %22, %24 : vector<8x32xf32>
    %c0_12 = arith.constant 0 : index
    %c0_13 = arith.constant 0 : index
    %26 = vector.load %arg4[%c0_12, %c0_13] : memref<32x256xf32, #tpu.memory_space<vmem>>, vector<32x256xf32>
    %cst_14 = arith.constant dense<0.000000e+00> : vector<8x256xf32>
    %27 = tpu.matmul %25, %26, %cst_14 {dimension_numbers = #tpu.dot_dimension_numbers<[1], [0], [0], [1], [0, 0, 1, 1], [], []>} : vector<8x32xf32>, vector<32x256xf32>, vector<8x256xf32> -> vector<8x256xf32>
    %c0_15 = arith.constant 0 : index
    %c0_16 = arith.constant 0 : index
    %28 = vector.load %arg5[%c0_15, %c0_16] : memref<1x256xf32, #tpu.memory_space<vmem>>, vector<1x256xf32>
    %29 = vector.broadcast %28 : vector<1x256xf32> to vector<8x256xf32>
    %30 = arith.addf %27, %29 : vector<8x256xf32>
    %cst_17 = arith.constant 0.000000e+00 : f32
    %31 = vector.broadcast %cst_17 : f32 to vector<8x256xf32>
    %32 = arith.cmpf oge, %30, %31 : vector<8x256xf32>
    %cst_18 = arith.constant 0.00999999977 : f32
    %33 = vector.broadcast %cst_18 : f32 to vector<8x256xf32>
    %34 = arith.mulf %33, %30 : vector<8x256xf32>
    %35 = arith.select %32, %30, %34 : vector<8x256xi1>, vector<8x256xf32>
    %c0_19 = arith.constant 0 : index
    %c0_20 = arith.constant 0 : index
    %36 = vector.load %arg6[%c0_19, %c0_20] : memref<256x128xf32, #tpu.memory_space<vmem>>, vector<256x128xf32>
    %cst_21 = arith.constant dense<0.000000e+00> : vector<8x128xf32>
    %37 = tpu.matmul %35, %36, %cst_21 {dimension_numbers = #tpu.dot_dimension_numbers<[1], [0], [0], [1], [0, 0, 1, 1], [], []>} : vector<8x256xf32>, vector<256x128xf32>, vector<8x128xf32> -> vector<8x128xf32>
    %c0_22 = arith.constant 0 : index
    %c0_23 = arith.constant 0 : index
    %38 = vector.load %arg7[%c0_22, %c0_23] : memref<1x128xf32, #tpu.memory_space<vmem>>, vector<1x128xf32>
    %39 = vector.broadcast %38 : vector<1x128xf32> to vector<8x128xf32>
    %40 = arith.addf %37, %39 : vector<8x128xf32>
    %cst_24 = arith.constant 0.000000e+00 : f32
    %41 = vector.broadcast %cst_24 : f32 to vector<8x128xf32>
    %42 = arith.cmpf oge, %40, %41 : vector<8x128xf32>
    %cst_25 = arith.constant 0.00999999977 : f32
    %43 = vector.broadcast %cst_25 : f32 to vector<8x128xf32>
    %44 = arith.mulf %43, %40 : vector<8x128xf32>
    %45 = arith.select %42, %40, %44 : vector<8x128xi1>, vector<8x128xf32>
    %c0_26 = arith.constant 0 : index
    %c0_27 = arith.constant 0 : index
    %46 = vector.load %arg8[%c0_26, %c0_27] : memref<128x128xf32, #tpu.memory_space<vmem>>, vector<128x128xf32>
    %cst_28 = arith.constant dense<0.000000e+00> : vector<8x128xf32>
    %47 = tpu.matmul %45, %46, %cst_28 {dimension_numbers = #tpu.dot_dimension_numbers<[1], [0], [0], [1], [0, 0, 1, 1], [], []>} : vector<8x128xf32>, vector<128x128xf32>, vector<8x128xf32> -> vector<8x128xf32>
    %c0_29 = arith.constant 0 : index
    %c0_30 = arith.constant 0 : index
    %48 = vector.load %arg9[%c0_29, %c0_30] : memref<1x128xf32, #tpu.memory_space<vmem>>, vector<1x128xf32>
    %49 = vector.broadcast %48 : vector<1x128xf32> to vector<8x128xf32>
    %50 = arith.addf %47, %49 : vector<8x128xf32>
    %c0_31 = arith.constant 0 : index
    %c0_32 = arith.constant 0 : index
    %51 = vector.load %arg10[%c0_31, %c0_32] : memref<8x128xf32, #tpu.memory_space<vmem>>, vector<8x128xf32>
    tpu.vector_store %arg10[%c0_31, %c0_32], %50 {strides = array<i32>} : memref<8x128xf32, #tpu.memory_space<vmem>>, vector<8x128xf32>,
    return
  }
  func.func @transform_0(%arg0: i32) -> (i32, i32, i32) {
    %c0_i32 = arith.constant 0 : i32
    %c0_i32_0 = arith.constant 0 : i32
    %c0_i32_1 = arith.constant 0 : i32
    return %arg0, %c0_i32, %c0_i32_0 : i32, i32, i32
  }
  func.func @transform_1(%arg0: i32) -> (i32, i32) {
    %c0_i32 = arith.constant 0 : i32
    %c0_i32_0 = arith.constant 0 : i32
    %c0_i32_1 = arith.constant 0 : i32
    return %c0_i32, %c0_i32_0 : i32, i32
  }
  func.func @transform_2(%arg0: i32) -> (i32, i32) {
    %c0_i32 = arith.constant 0 : i32
    %c0_i32_0 = arith.constant 0 : i32
    %c0_i32_1 = arith.constant 0 : i32
    return %c0_i32, %c0_i32_0 : i32, i32
  }
  func.func @transform_3(%arg0: i32) -> (i32, i32) {
    %c0_i32 = arith.constant 0 : i32
    %c0_i32_0 = arith.constant 0 : i32
    %c0_i32_1 = arith.constant 0 : i32
    return %c0_i32, %c0_i32_0 : i32, i32
  }
  func.func @transform_4(%arg0: i32) -> (i32, i32) {
    %c0_i32 = arith.constant 0 : i32
    %c0_i32_0 = arith.constant 0 : i32
    %c0_i32_1 = arith.constant 0 : i32
    return %c0_i32, %c0_i32_0 : i32, i32
  }
  func.func @transform_5(%arg0: i32) -> (i32, i32) {
    %c0_i32 = arith.constant 0 : i32
    %c0_i32_0 = arith.constant 0 : i32
    %c0_i32_1 = arith.constant 0 : i32
    return %c0_i32, %c0_i32_0 : i32, i32
  }
  func.func @transform_6(%arg0: i32) -> (i32, i32) {
    %c0_i32 = arith.constant 0 : i32
    %c0_i32_0 = arith.constant 0 : i32
    %c0_i32_1 = arith.constant 0 : i32
    return %c0_i32, %c0_i32_0 : i32, i32
  }
  func.func @transform_7(%arg0: i32) -> (i32, i32) {
    %c0_i32 = arith.constant 0 : i32
    %c0_i32_0 = arith.constant 0 : i32
    %c0_i32_1 = arith.constant 0 : i32
    return %c0_i32, %c0_i32_0 : i32, i32
  }
  func.func @transform_8(%arg0: i32) -> (i32, i32) {
    %c0_i32 = arith.constant 0 : i32
    %c0_i32_0 = arith.constant 0 : i32
    %c0_i32_1 = arith.constant 0 : i32
    return %c0_i32, %c0_i32_0 : i32, i32
  }
  func.func @transform_9(%arg0: i32) -> (i32, i32) {
    %c0_i32 = arith.constant 0 : i32
    %c0_i32_0 = arith.constant 0 : i32
    return %arg0, %c0_i32 : i32, i32
  }
}

</mosaic_0001>

<llo_original>
// kernel: tpu_custom_call.1
$region0: #{tpu_custom_call.1}
  #allocation0 [shape = 'u32[]', space=smem, size = 0x4, offset = 0x4, fixed_abs, tag = 'smem constant byte address 0x4 - core index']
  #allocation1 [shape = 'u32[144,128]{1,0:T(1,128)}', space=vmem, size = 0x12000, scoped, tag = 'internal scratch']
  %s0 = inlined_call_operand.vmem [shape: f32[16,32,16], index: 0, kind: input, shape index: {}]
  %s1 = inlined_call_operand.vmem [shape: f32[1,32], index: 1, kind: input, shape index: {}]
  %s2 = inlined_call_operand.vmem [shape: f32[1,32], index: 2, kind: input, shape index: {}]
  %s3 = inlined_call_operand.vmem [shape: f32[32,256], index: 3, kind: input, shape index: {}]
  %s4 = inlined_call_operand.vmem [shape: f32[1,256], index: 4, kind: input, shape index: {}]
  %s5 = inlined_call_operand.vmem [shape: f32[256,128], index: 5, kind: input, shape index: {}]
  %s6 = inlined_call_operand.vmem [shape: f32[1,128], index: 6, kind: input, shape index: {}]
  %s7 = inlined_call_operand.vmem [shape: f32[128,128], index: 7, kind: input, shape index: {}]
  %s8 = inlined_call_operand.vmem [shape: f32[1,128], index: 8, kind: input, shape index: {}]
  %s9 = inlined_call_operand.hbm [shape: f32[16,128], index: 9, kind: output, shape index: {}]
  %s10 = sld [smem:[#allocation0]]
  $region69: #{tpu_custom_call.1} parent=0
    _
  %s12 = ssub.s32 1, %s10
  %s13 = scalar_select 0, %s12, %s10
  $region1: #{tpu_custom_call.1} parent=0
    #allocation2 [shape = 'u8[8192]{0}', space=vmem, size = 0x2000, scoped, tag = 'output window, operand 0']
    #allocation3 [shape = 's32[2]{0}', space=sflag, size = 0x8, scoped, tag = 'scoped memory for tpu_custom_call.1']
    %14 = vsyncpa [#allocation3], 0
    %s15 = scalar_lea.sflag [#allocation3], 1
    %16 = vsyncpa %s15, 0
    loop: start=0, step=1, limit=4
    $region2: #{tpu_custom_call.1} parent=1 // loop_pre_header
      _
    $region3: #{tpu_custom_call.1} parent=1 // loop_header
      %s18 = sphi 0, %s22
      %p19 = scmp.ge.s32.totalorder %s18, 4
      %s28 = sphi 0, %s30
      %s31 = sphi 0, %s28
      %s32 = sphi 0, %s31
      %s48 = sphi 0, %s32
      %s52 = sphi 0, %s52
      %s54 = sphi 0, %s52
      %s55 = sphi 0, %s54
      %s69 = sphi 0, %s55
      %s73 = sphi 0, %s73
      %s75 = sphi 0, %s73
      %s76 = sphi 0, %s75
      %s90 = sphi 0, %s76
      %s94 = sphi 0, %s94
      %s96 = sphi 0, %s94
      %s97 = sphi 0, %s96
      %s111 = sphi 0, %s97
      %s115 = sphi 0, %s115
      %s117 = sphi 0, %s115
      %s118 = sphi 0, %s117
      %s132 = sphi 0, %s118
      %s136 = sphi 0, %s136
      %s138 = sphi 0, %s136
      %s139 = sphi 0, %s138
      %s153 = sphi 0, %s139
      %s157 = sphi 0, %s157
      %s159 = sphi 0, %s157
      %s160 = sphi 0, %s159
      %s174 = sphi 0, %s160
      %s178 = sphi 0, %s178
      %s180 = sphi 0, %s178
      %s181 = sphi 0, %s180
      %s195 = sphi 0, %s181
      %s199 = sphi 0, %s199
      %s201 = sphi 0, %s199
      %s202 = sphi 0, %s201
      %s216 = sphi 0, %s202
      %s222 = sphi 0, %s224
      %s225 = sphi 0, %s222
      %s226 = sphi 0, %s225
      %s242 = sphi 0, %s226
    $region4: #{tpu_custom_call.1} parent=1 // loop_header_branch
      %21 = sbr.rel (%p19) target = $region8
    $region5: #{tpu_custom_call.1} parent=1 // loop_body
      %s23 = ssub.s32 %s18, 1
      %s24 = ssub.s32 %s18, 2
      %s25 = sadd.s32 %s18, 1
      %s26 = ssub.s32 %s18, %s25
      %p27 = scmp.eq.s32.totalorder %s26, 0
      %s29 = sadd.s32 %s28, 1
      %s30 = scalar_select %p27, %s28, %s29
      %p33 = pneg %p27
      %p34 = scmp.eq.s32.totalorder %s18, 1
      %p35 = por %p33, %p34
      %p36 = scmp.ne.s32.totalorder %s28, %s31
      %p37 = scmp.eq.s32.totalorder %s18, 0
      %p38 = por %p36, %p37
      %p39 = scmp.ne.s32.totalorder %s28, %s31
      %p40 = scmp.eq.s32.totalorder %s23, 1
      %p41 = por %p39, %p40
      %p42 = scmp.ne.s32.totalorder %s31, %s32
      %p43 = scmp.eq.s32.totalorder %s23, 0
      %p44 = por %p42, %p43
      %p45 = scmp.ne.s32.totalorder %s31, %s32
      %p46 = scmp.eq.s32.totalorder %s24, 1
      %p47 = por %p45, %p46
      %p49 = scmp.ne.s32.totalorder %s32, %s48
      %p50 = scmp.eq.s32.totalorder %s24, 0
      %p51 = por %p49, %p50
      %s53 = sadd.s32 %s52, 1
      %p56 = scmp.eq.s32.totalorder %s18, 1
      %p57 = scmp.ne.s32.totalorder %s52, %s54
      %p58 = scmp.eq.s32.totalorder %s18, 0
      %p59 = por %p57, %p58
      %p60 = scmp.ne.s32.totalorder %s52, %s54
      %p61 = scmp.eq.s32.totalorder %s23, 1
      %p62 = por %p60, %p61
      %p63 = scmp.ne.s32.totalorder %s54, %s55
      %p64 = scmp.eq.s32.totalorder %s23, 0
      %p65 = por %p63, %p64
      %p66 = scmp.ne.s32.totalorder %s54, %s55
      %p67 = scmp.eq.s32.totalorder %s24, 1
      %p68 = por %p66, %p67
      %p70 = scmp.ne.s32.totalorder %s55, %s69
      %p71 = scmp.eq.s32.totalorder %s24, 0
      %p72 = por %p70, %p71
      %s74 = sadd.s32 %s73, 1
      %p77 = scmp.eq.s32.totalorder %s18, 1
      %p78 = scmp.ne.s32.totalorder %s73, %s75
      %p79 = scmp.eq.s32.totalorder %s18, 0
      %p80 = por %p78, %p79
      %p81 = scmp.ne.s32.totalorder %s73, %s75
      %p82 = scmp.eq.s32.totalorder %s23, 1
      %p83 = por %p81, %p82
      %p84 = scmp.ne.s32.totalorder %s75, %s76
      %p85 = scmp.eq.s32.totalorder %s23, 0
      %p86 = por %p84, %p85
      %p87 = scmp.ne.s32.totalorder %s75, %s76
      %p88 = scmp.eq.s32.totalorder %s24, 1
      %p89 = por %p87, %p88
      %p91 = scmp.ne.s32.totalorder %s76, %s90
      %p92 = scmp.eq.s32.totalorder %s24, 0
      %p93 = por %p91, %p92
      %s95 = sadd.s32 %s94, 1
      %p98 = scmp.eq.s32.totalorder %s18, 1
      %p99 = scmp.ne.s32.totalorder %s94, %s96
      %p100 = scmp.eq.s32.totalorder %s18, 0
      %p101 = por %p99, %p100
      %p102 = scmp.ne.s32.totalorder %s94, %s96
      %p103 = scmp.eq.s32.totalorder %s23, 1
      %p104 = por %p102, %p103
      %p105 = scmp.ne.s32.totalorder %s96, %s97
      %p106 = scmp.eq.s32.totalorder %s23, 0
      %p107 = por %p105, %p106
      %p108 = scmp.ne.s32.totalorder %s96, %s97
      %p109 = scmp.eq.s32.totalorder %s24, 1
      %p110 = por %p108, %p109
      %p112 = scmp.ne.s32.totalorder %s97, %s111
      %p113 = scmp.eq.s32.totalorder %s24, 0
      %p114 = por %p112, %p113
      %s116 = sadd.s32 %s115, 1
      %p119 = scmp.eq.s32.totalorder %s18, 1
      %p120 = scmp.ne.s32.totalorder %s115, %s117
      %p121 = scmp.eq.s32.totalorder %s18, 0
      %p122 = por %p120, %p121
      %p123 = scmp.ne.s32.totalorder %s115, %s117
      %p124 = scmp.eq.s32.totalorder %s23, 1
      %p125 = por %p123, %p124
      %p126 = scmp.ne.s32.totalorder %s117, %s118
      %p127 = scmp.eq.s32.totalorder %s23, 0
      %p128 = por %p126, %p127
      %p129 = scmp.ne.s32.totalorder %s117, %s118
      %p130 = scmp.eq.s32.totalorder %s24, 1
      %p131 = por %p129, %p130
      %p133 = scmp.ne.s32.totalorder %s118, %s132
      %p134 = scmp.eq.s32.totalorder %s24, 0
      %p135 = por %p133, %p134
      %s137 = sadd.s32 %s136, 1
      %p140 = scmp.eq.s32.totalorder %s18, 1
      %p141 = scmp.ne.s32.totalorder %s136, %s138
      %p142 = scmp.eq.s32.totalorder %s18, 0
      %p143 = por %p141, %p142
      %p144 = scmp.ne.s32.totalorder %s136, %s138
      %p145 = scmp.eq.s32.totalorder %s23, 1
      %p146 = por %p144, %p145
      %p147 = scmp.ne.s32.totalorder %s138, %s139
      %p148 = scmp.eq.s32.totalorder %s23, 0
      %p149 = por %p147, %p148
      %p150 = scmp.ne.s32.totalorder %s138, %s139
      %p151 = scmp.eq.s32.totalorder %s24, 1
      %p152 = por %p150, %p151
      %p154 = scmp.ne.s32.totalorder %s139, %s153
      %p155 = scmp.eq.s32.totalorder %s24, 0
      %p156 = por %p154, %p155
      %s158 = sadd.s32 %s157, 1
      %p161 = scmp.eq.s32.totalorder %s18, 1
      %p162 = scmp.ne.s32.totalorder %s157, %s159
      %p163 = scmp.eq.s32.totalorder %s18, 0
      %p164 = por %p162, %p163
      %p165 = scmp.ne.s32.totalorder %s157, %s159
      %p166 = scmp.eq.s32.totalorder %s23, 1
      %p167 = por %p165, %p166
      %p168 = scmp.ne.s32.totalorder %s159, %s160
      %p169 = scmp.eq.s32.totalorder %s23, 0
      %p170 = por %p168, %p169
      %p171 = scmp.ne.s32.totalorder %s159, %s160
      %p172 = scmp.eq.s32.totalorder %s24, 1
      %p173 = por %p171, %p172
      %p175 = scmp.ne.s32.totalorder %s160, %s174
      %p176 = scmp.eq.s32.totalorder %s24, 0
      %p177 = por %p175, %p176
      %s179 = sadd.s32 %s178, 1
      %p182 = scmp.eq.s32.totalorder %s18, 1
      %p183 = scmp.ne.s32.totalorder %s178, %s180
      %p184 = scmp.eq.s32.totalorder %s18, 0
      %p185 = por %p183, %p184
      %p186 = scmp.ne.s32.totalorder %s178, %s180
      %p187 = scmp.eq.s32.totalorder %s23, 1
      %p188 = por %p186, %p187
      %p189 = scmp.ne.s32.totalorder %s180, %s181
      %p190 = scmp.eq.s32.totalorder %s23, 0
      %p191 = por %p189, %p190
      %p192 = scmp.ne.s32.totalorder %s180, %s181
      %p193 = scmp.eq.s32.totalorder %s24, 1
      %p194 = por %p192, %p193
      %p196 = scmp.ne.s32.totalorder %s181, %s195
      %p197 = scmp.eq.s32.totalorder %s24, 0
      %p198 = por %p196, %p197
      %s200 = sadd.s32 %s199, 1
      %p203 = scmp.eq.s32.totalorder %s18, 1
      %p204 = scmp.ne.s32.totalorder %s199, %s201
      %p205 = scmp.eq.s32.totalorder %s18, 0
      %p206 = por %p204, %p205
      %p207 = scmp.ne.s32.totalorder %s199, %s201
      %p208 = scmp.eq.s32.totalorder %s23, 1
      %p209 = por %p207, %p208
      %p210 = scmp.ne.s32.totalorder %s201, %s202
      %p211 = scmp.eq.s32.totalorder %s23, 0
      %p212 = por %p210, %p211
      %p213 = scmp.ne.s32.totalorder %s201, %s202
      %p214 = scmp.eq.s32.totalorder %s24, 1
      %p215 = por %p213, %p214
      %p217 = scmp.ne.s32.totalorder %s202, %s216
      %p218 = scmp.eq.s32.totalorder %s24, 0
      %p219 = por %p217, %p218
      %s220 = ssub.s32 %s18, %s25
      %p221 = scmp.eq.s32.totalorder %s220, 0
      %s223 = sadd.s32 %s222, 1
      %s224 = scalar_select %p221, %s222, %s223
      %p227 = pneg %p221
      %p228 = scmp.eq.s32.totalorder %s18, 1
      %p229 = por %p227, %p228
      %p230 = scmp.ne.s32.totalorder %s222, %s225
      %p231 = scmp.eq.s32.totalorder %s18, 0
      %p232 = por %p230, %p231
      %p233 = scmp.ne.s32.totalorder %s222, %s225
      %p234 = scmp.eq.s32.totalorder %s23, 1
      %p235 = por %p233, %p234
      %p236 = scmp.ne.s32.totalorder %s225, %s226
      %p237 = scmp.eq.s32.totalorder %s23, 0
      %p238 = por %p236, %p237
      %p239 = scmp.ne.s32.totalorder %s225, %s226
      %p240 = scmp.eq.s32.totalorder %s24, 1
      %p241 = por %p239, %p240
      %p243 = scmp.ne.s32.totalorder %s226, %s242
      %p244 = scmp.eq.s32.totalorder %s24, 0
      %p245 = por %p243, %p244
      %p246 = scmp.le.s32.totalorder 1, %s18
      %p247 = scmp.lt.s32.totalorder %s18, 3
      %p248 = pnand %p246, %p247
      %p249 = pneg %p248
      // Predicated region
      $region9: #{tpu_custom_call.1} parent=5 // pred_check
        _
      $region10: #{tpu_custom_call.1} parent=5 // pred_check_branch
        %251 = sbr.rel (%p248) target = $region12
      $region11: #{tpu_custom_call.1} parent=5 // pred_region
        %s252 = ssub.s32 %s18, 1
        // Predicated region
        $region13: #{tpu_custom_call.1} parent=11 // pred_check
          %p253 = pneg %p65
        $region14: #{tpu_custom_call.1} parent=11 // pred_check_branch
          %255 = sbr.rel (%p253) target = $region16
        $region15: #{tpu_custom_call.1} parent=11 // pred_region
          _
        $region16: #{tpu_custom_call.1} parent=11 // pred_fallthru
          _
        // Predicated region
        $region17: #{tpu_custom_call.1} parent=11 // pred_check
          %p256 = pneg %p86
        $region18: #{tpu_custom_call.1} parent=11 // pred_check_branch
          %258 = sbr.rel (%p256) target = $region20
        $region19: #{tpu_custom_call.1} parent=11 // pred_region
          _
        $region20: #{tpu_custom_call.1} parent=11 // pred_fallthru
          _
        // Predicated region
        $region21: #{tpu_custom_call.1} parent=11 // pred_check
          %p259 = pneg %p107
        $region22: #{tpu_custom_call.1} parent=11 // pred_check_branch
          %261 = sbr.rel (%p259) target = $region24
        $region23: #{tpu_custom_call.1} parent=11 // pred_region
          _
        $region24: #{tpu_custom_call.1} parent=11 // pred_fallthru
          _
        // Predicated region
        $region25: #{tpu_custom_call.1} parent=11 // pred_check
          %p262 = pneg %p128
        $region26: #{tpu_custom_call.1} parent=11 // pred_check_branch
          %264 = sbr.rel (%p262) target = $region28
        $region27: #{tpu_custom_call.1} parent=11 // pred_region
          _
        $region28: #{tpu_custom_call.1} parent=11 // pred_fallthru
          _
        // Predicated region
        $region29: #{tpu_custom_call.1} parent=11 // pred_check
          %p265 = pneg %p149
        $region30: #{tpu_custom_call.1} parent=11 // pred_check_branch
          %267 = sbr.rel (%p265) target = $region32
        $region31: #{tpu_custom_call.1} parent=11 // pred_region
          _
        $region32: #{tpu_custom_call.1} parent=11 // pred_fallthru
          _
        // Predicated region
        $region33: #{tpu_custom_call.1} parent=11 // pred_check
          %p268 = pneg %p170
        $region34: #{tpu_custom_call.1} parent=11 // pred_check_branch
          %270 = sbr.rel (%p268) target = $region36
        $region35: #{tpu_custom_call.1} parent=11 // pred_region
          _
        $region36: #{tpu_custom_call.1} parent=11 // pred_fallthru
          _
        // Predicated region
        $region37: #{tpu_custom_call.1} parent=11 // pred_check
          %p271 = pneg %p191
        $region38: #{tpu_custom_call.1} parent=11 // pred_check_branch
          %273 = sbr.rel (%p271) target = $region40
        $region39: #{tpu_custom_call.1} parent=11 // pred_region
          _
        $region40: #{tpu_custom_call.1} parent=11 // pred_fallthru
          _
        // Predicated region
        $region41: #{tpu_custom_call.1} parent=11 // pred_check
          %p274 = pneg %p212
        $region42: #{tpu_custom_call.1} parent=11 // pred_check_branch
          %276 = sbr.rel (%p274) target = $region44
        $region43: #{tpu_custom_call.1} parent=11 // pred_region
          _
        $region44: #{tpu_custom_call.1} parent=11 // pred_fallthru
          _
      $region12: #{tpu_custom_call.1} parent=5 // pred_fallthru
        _
      %p277 = scmp.lt.s32.totalorder %s18, 2
      // Predicated region
      $region45: #{tpu_custom_call.1} parent=5 // pred_check
        %p278 = pneg %p277
      $region46: #{tpu_custom_call.1} parent=5 // pred_check_branch
        %280 = sbr.rel (%p278) target = $region48
      $region47: #{tpu_custom_call.1} parent=5 // pred_region
        // Predicated region
        $region49: #{tpu_custom_call.1} parent=47 // pred_check
          %p281 = pneg %p38
        $region50: #{tpu_custom_call.1} parent=47 // pred_check_branch
          %283 = sbr.rel (%p281) target = $region52
        $region51: #{tpu_custom_call.1} parent=47 // pred_region
          %s284 = smul.u32 8, %s18
          %p285 = scmp.lt.s32.totalorder %s284, 15
          %s286 = scalar_select %p285, %s284, 15
          %s287 = smul.addr %s286, 4
          %s288 = smul.addr %s287, 8
          %s289 = scalar_lea.vmem %s0, %s288
          %s290 = smul.u32 8, %s18
        $region52: #{tpu_custom_call.1} parent=47 // pred_fallthru
          _
      $region48: #{tpu_custom_call.1} parent=5 // pred_fallthru
        _
      %p291 = scmp.le.s32.totalorder 1, %s18
      %p292 = scmp.lt.s32.totalorder %s18, 3
      %p293 = pnand %p291, %p292
      %p294 = pneg %p293
      // Predicated region
      $region53: #{tpu_custom_call.1} parent=5 // pred_check
        _
      $region54: #{tpu_custom_call.1} parent=5 // pred_check_branch
        %296 = sbr.rel (%p293) target = $region56
      $region55: #{tpu_custom_call.1} parent=5 // pred_region
        %s297 = ssub.s32 %s18, 1
        %s298 = smul.u32 8, %s23
        %p299 = scmp.lt.s32.totalorder %s298, 15
        %s300 = scalar_select %p299, %s298, 15
        %s301 = smul.addr %s300, 4
        %s302 = smul.addr %s301, 8
        %s303 = scalar_lea.vmem %s0, %s302
        %p304 = pneg %p44
        %p305 = pneg %p41
        %p306 = pneg %p65
        %p307 = pneg %p62
        %p308 = pneg %p86
        %p309 = pneg %p83
        %p310 = pneg %p107
        %p311 = pneg %p104
        %p312 = pneg %p128
        %p313 = pneg %p125
        %p314 = pneg %p149
        %p315 = pneg %p146
        %p316 = pneg %p170
        %p317 = pneg %p167
        %p318 = pneg %p191
        %p319 = pneg %p188
        %p320 = pneg %p212
        %p321 = pneg %p209
        %p322 = pneg %p238
        %p323 = pneg %p235
        %s324 = sand.u32 %s225, 1
        %s325 = scalar_lea.sflag [#allocation3], %s324
        %s326 = sand.u32 %s225, 1
        %s327 = smul.addr %s326, 8
        %s328 = scalar_lea.vmem [#allocation2], %s327
        %s329 = smul.u32 8, %s23
        %p330 = scmp.lt.s32.totalorder %s329, 15
        %s331 = scalar_select %p330, %s329, 15
        %s332 = smul.addr %s331, 4
        %s333 = smul.addr %s332, 8
        %s334 = scalar_lea.vmem %s0, %s333
        %s335 = smul.u32 8, %s23
        %v336 = vld [vmem:[%s334] sm:$0xff]
        %v337 = vld [vmem:[%s334 + $0x8] sm:$0xff]
        %v338 = vld [vmem:[%s334 + $0x10] sm:$0xff]
        %v339 = vld [vmem:[%s334 + $0x18] sm:$0xff]
        %v340 = vld [vmem:[%s334 + $0x20] sm:$0xff]
        %v341 = vld [vmem:[%s334 + $0x28] sm:$0xff]
        %v342 = vld [vmem:[%s334 + $0x30] sm:$0xff]
        %v343 = vld [vmem:[%s334 + $0x38] sm:$0xff]
        %v344 = vld [vmem:[%s334 + $0x40] sm:$0xff]
        %v345 = vld [vmem:[%s334 + $0x48] sm:$0xff]
        %v346 = vld [vmem:[%s334 + $0x50] sm:$0xff]
        %v347 = vld [vmem:[%s334 + $0x58] sm:$0xff]
        %v348 = vld [vmem:[%s334 + $0x60] sm:$0xff]
        %v349 = vld [vmem:[%s334 + $0x68] sm:$0xff]
        %v350 = vld [vmem:[%s334 + $0x70] sm:$0xff]
        %v351 = vld [vmem:[%s334 + $0x78] sm:$0xff]
        %v352 = vld [vmem:[%s334 + $0x80] sm:$0xff]
        %v353 = vld [vmem:[%s334 + $0x88] sm:$0xff]
        %v354 = vld [vmem:[%s334 + $0x90] sm:$0xff]
        %v355 = vld [vmem:[%s334 + $0x98] sm:$0xff]
        %v356 = vld [vmem:[%s334 + $0xa0] sm:$0xff]
        %v357 = vld [vmem:[%s334 + $0xa8] sm:$0xff]
        %v358 = vld [vmem:[%s334 + $0xb0] sm:$0xff]
        %v359 = vld [vmem:[%s334 + $0xb8] sm:$0xff]
        %v360 = vld [vmem:[%s334 + $0xc0] sm:$0xff]
        %v361 = vld [vmem:[%s334 + $0xc8] sm:$0xff]
        %v362 = vld [vmem:[%s334 + $0xd0] sm:$0xff]
        %v363 = vld [vmem:[%s334 + $0xd8] sm:$0xff]
        %v364 = vld [vmem:[%s334 + $0xe0] sm:$0xff]
        %v365 = vld [vmem:[%s334 + $0xe8] sm:$0xff]
        %v366 = vld [vmem:[%s334 + $0xf0] sm:$0xff]
        %v367 = vld [vmem:[%s334 + $0xf8] sm:$0xff]
        %vm368 = vcmask 130048
        %v369 = vsel %vm368, %v336, 0.0
        %370 = vadd.xlane.f32.xlu0 %v369
        %v371 = vpop.xlane.xlu0 %370
        %v372 = vsel %vm368, %v337, 0.0
        %373 = vadd.xlane.f32.xlu0 %v372
        %v374 = vpop.xlane.xlu0 %373
        %v375 = vsel %vm368, %v338, 0.0
        %376 = vadd.xlane.f32.xlu0 %v375
        %v377 = vpop.xlane.xlu0 %376
        %v378 = vsel %vm368, %v339, 0.0
        %379 = vadd.xlane.f32.xlu0 %v378
        %v380 = vpop.xlane.xlu0 %379
        %v381 = vsel %vm368, %v340, 0.0
        %382 = vadd.xlane.f32.xlu0 %v381
        %v383 = vpop.xlane.xlu0 %382
        %v384 = vsel %vm368, %v341, 0.0
        %385 = vadd.xlane.f32.xlu0 %v384
        %v386 = vpop.xlane.xlu0 %385
        %v387 = vsel %vm368, %v342, 0.0
        %388 = vadd.xlane.f32.xlu0 %v387
        %v389 = vpop.xlane.xlu0 %388
        %v390 = vsel %vm368, %v343, 0.0
        %391 = vadd.xlane.f32.xlu0 %v390
        %v392 = vpop.xlane.xlu0 %391
        %v393 = vsel %vm368, %v344, 0.0
        %394 = vadd.xlane.f32.xlu0 %v393
        %v395 = vpop.xlane.xlu0 %394
        %v396 = vsel %vm368, %v345, 0.0
        %397 = vadd.xlane.f32.xlu0 %v396
        %v398 = vpop.xlane.xlu0 %397
        %v399 = vsel %vm368, %v346, 0.0
        %400 = vadd.xlane.f32.xlu0 %v399
        %v401 = vpop.xlane.xlu0 %400
        %v402 = vsel %vm368, %v347, 0.0
        %403 = vadd.xlane.f32.xlu0 %v402
        %v404 = vpop.xlane.xlu0 %403
        %v405 = vsel %vm368, %v348, 0.0
        %406 = vadd.xlane.f32.xlu0 %v405
        %v407 = vpop.xlane.xlu0 %406
        %v408 = vsel %vm368, %v349, 0.0
        %409 = vadd.xlane.f32.xlu0 %v408
        %v410 = vpop.xlane.xlu0 %409
        %v411 = vsel %vm368, %v350, 0.0
        %412 = vadd.xlane.f32.xlu0 %v411
        %v413 = vpop.xlane.xlu0 %412
        %v414 = vsel %vm368, %v351, 0.0
        %415 = vadd.xlane.f32.xlu0 %v414
        %v416 = vpop.xlane.xlu0 %415
        %v417 = vsel %vm368, %v352, 0.0
        %418 = vadd.xlane.f32.xlu0 %v417
        %v419 = vpop.xlane.xlu0 %418
        %v420 = vsel %vm368, %v353, 0.0
        %421 = vadd.xlane.f32.xlu0 %v420
        %v422 = vpop.xlane.xlu0 %421
        %v423 = vsel %vm368, %v354, 0.0
        %424 = vadd.xlane.f32.xlu0 %v423
        %v425 = vpop.xlane.xlu0 %424
        %v426 = vsel %vm368, %v355, 0.0
        %427 = vadd.xlane.f32.xlu0 %v426
        %v428 = vpop.xlane.xlu0 %427
        %v429 = vsel %vm368, %v356, 0.0
        %430 = vadd.xlane.f32.xlu0 %v429
        %v431 = vpop.xlane.xlu0 %430
        %v432 = vsel %vm368, %v357, 0.0
        %433 = vadd.xlane.f32.xlu0 %v432
        %v434 = vpop.xlane.xlu0 %433
        %v435 = vsel %vm368, %v358, 0.0
        %436 = vadd.xlane.f32.xlu0 %v435
        %v437 = vpop.xlane.xlu0 %436
        %v438 = vsel %vm368, %v359, 0.0
        %439 = vadd.xlane.f32.xlu0 %v438
        %v440 = vpop.xlane.xlu0 %439
        %v441 = vsel %vm368, %v360, 0.0
        %442 = vadd.xlane.f32.xlu0 %v441
        %v443 = vpop.xlane.xlu0 %442
        %v444 = vsel %vm368, %v361, 0.0
        %445 = vadd.xlane.f32.xlu0 %v444
        %v446 = vpop.xlane.xlu0 %445
        %v447 = vsel %vm368, %v362, 0.0
        %448 = vadd.xlane.f32.xlu0 %v447
        %v449 = vpop.xlane.xlu0 %448
        %v450 = vsel %vm368, %v363, 0.0
        %451 = vadd.xlane.f32.xlu0 %v450
        %v452 = vpop.xlane.xlu0 %451
        %v453 = vsel %vm368, %v364, 0.0
        %454 = vadd.xlane.f32.xlu0 %v453
        %v455 = vpop.xlane.xlu0 %454
        %v456 = vsel %vm368, %v365, 0.0
        %457 = vadd.xlane.f32.xlu0 %v456
        %v458 = vpop.xlane.xlu0 %457
        %v459 = vsel %vm368, %v366, 0.0
        %460 = vadd.xlane.f32.xlu0 %v459
        %v461 = vpop.xlane.xlu0 %460
        %v462 = vsel %vm368, %v367, 0.0
        %463 = vadd.xlane.f32.xlu0 %v462
        %v464 = vpop.xlane.xlu0 %463
        %v465 = vrcp.pop 16.0
        %v466 = vmul.f32 %v371, %v465
        %v467 = vmul.f32 %v374, %v465
        %v468 = vmul.f32 %v377, %v465
        %v469 = vmul.f32 %v380, %v465
        %v470 = vmul.f32 %v383, %v465
        %v471 = vmul.f32 %v386, %v465
        %v472 = vmul.f32 %v389, %v465
        %v473 = vmul.f32 %v392, %v465
        %v474 = vmul.f32 %v395, %v465
        %v475 = vmul.f32 %v398, %v465
        %v476 = vmul.f32 %v401, %v465
        %v477 = vmul.f32 %v404, %v465
        %v478 = vmul.f32 %v407, %v465
        %v479 = vmul.f32 %v410, %v465
        %v480 = vmul.f32 %v413, %v465
        %v481 = vmul.f32 %v416, %v465
        %v482 = vmul.f32 %v419, %v465
        %v483 = vmul.f32 %v422, %v465
        %v484 = vmul.f32 %v425, %v465
        %v485 = vmul.f32 %v428, %v465
        %v486 = vmul.f32 %v431, %v465
        %v487 = vmul.f32 %v434, %v465
        %v488 = vmul.f32 %v437, %v465
        %v489 = vmul.f32 %v440, %v465
        %v490 = vmul.f32 %v443, %v465
        %v491 = vmul.f32 %v446, %v465
        %v492 = vmul.f32 %v449, %v465
        %v493 = vmul.f32 %v452, %v465
        %v494 = vmul.f32 %v455, %v465
        %v495 = vmul.f32 %v458, %v465
        %v496 = vmul.f32 %v461, %v465
        %v497 = vmul.f32 %v464, %v465
        %v530 = vlaneseq
        %v531 = vand.u32 %v530, 127
        %v532 = vlaneseq
        %v533 = vshrl.u32 %v532, 7
        %v534 = vsub.s32 %v531, %v533
        %v535 = vrot.slane %v466, %v534
        %v536 = vadd.s32 %v531, 4294967288
        %v537 = vlaneseq
        %v538 = vshrl.u32 %v537, 7
        %v539 = vsub.s32 %v536, %v538
        %v540 = vrot.slane %v467, %v539
        %vm541 = vcmask 130112
        %v542 = vsel %vm541, %v540, %v535
        %v543 = vadd.s32 %v531, 4294967280
        %v544 = vlaneseq
        %v545 = vshrl.u32 %v544, 7
        %v546 = vsub.s32 %v543, %v545
        %v547 = vrot.slane %v468, %v546
        %vm548 = vcmask 195712
        %v549 = vsel %vm548, %v547, %v542
        %v550 = vadd.s32 %v531, 4294967272
        %v551 = vlaneseq
        %v552 = vshrl.u32 %v551, 7
        %v553 = vsub.s32 %v550, %v552
        %v554 = vrot.slane %v469, %v553
        %vm555 = vcmask 261312
        %v556 = vsel %vm555, %v554, %v549
        %v557 = vlaneseq
        %v558 = vshrl.u32 %v557, 7
        %v559 = vsub.s32 %v531, %v558
        %v560 = vrot.slane %v470, %v559
        %v561 = vlaneseq
        %v562 = vshrl.u32 %v561, 7
        %v563 = vsub.s32 %v536, %v562
        %v564 = vrot.slane %v471, %v563
        %v565 = vsel %vm541, %v564, %v560
        %v566 = vlaneseq
        %v567 = vshrl.u32 %v566, 7
        %v568 = vsub.s32 %v543, %v567
        %v569 = vrot.slane %v472, %v568
        %v570 = vsel %vm548, %v569, %v565
        %v571 = vlaneseq
        %v572 = vshrl.u32 %v571, 7
        %v573 = vsub.s32 %v550, %v572
        %v574 = vrot.slane %v473, %v573
        %v575 = vsel %vm555, %v574, %v570
        %v576 = vlaneseq
        %v577 = vshrl.u32 %v576, 7
        %v578 = vsub.s32 %v531, %v577
        %v579 = vrot.slane %v474, %v578
        %v580 = vlaneseq
        %v581 = vshrl.u32 %v580, 7
        %v582 = vsub.s32 %v536, %v581
        %v583 = vrot.slane %v475, %v582
        %v584 = vsel %vm541, %v583, %v579
        %v585 = vlaneseq
        %v586 = vshrl.u32 %v585, 7
        %v587 = vsub.s32 %v543, %v586
        %v588 = vrot.slane %v476, %v587
        %v589 = vsel %vm548, %v588, %v584
        %v590 = vlaneseq
        %v591 = vshrl.u32 %v590, 7
        %v592 = vsub.s32 %v550, %v591
        %v593 = vrot.slane %v477, %v592
        %v594 = vsel %vm555, %v593, %v589
        %v595 = vlaneseq
        %v596 = vshrl.u32 %v595, 7
        %v597 = vsub.s32 %v531, %v596
        %v598 = vrot.slane %v478, %v597
        %v599 = vlaneseq
        %v600 = vshrl.u32 %v599, 7
        %v601 = vsub.s32 %v536, %v600
        %v602 = vrot.slane %v479, %v601
        %v603 = vsel %vm541, %v602, %v598
        %v604 = vlaneseq
        %v605 = vshrl.u32 %v604, 7
        %v606 = vsub.s32 %v543, %v605
        %v607 = vrot.slane %v480, %v606
        %v608 = vsel %vm548, %v607, %v603
        %v609 = vlaneseq
        %v610 = vshrl.u32 %v609, 7
        %v611 = vsub.s32 %v550, %v610
        %v612 = vrot.slane %v481, %v611
        %v613 = vsel %vm555, %v612, %v608
        %v614 = vlaneseq
        %v615 = vshrl.u32 %v614, 7
        %v616 = vsub.s32 %v531, %v615
        %v617 = vrot.slane %v482, %v616
        %v618 = vlaneseq
        %v619 = vshrl.u32 %v618, 7
        %v620 = vsub.s32 %v536, %v619
        %v621 = vrot.slane %v483, %v620
        %v622 = vsel %vm541, %v621, %v617
        %v623 = vlaneseq
        %v624 = vshrl.u32 %v623, 7
        %v625 = vsub.s32 %v543, %v624
        %v626 = vrot.slane %v484, %v625
        %v627 = vsel %vm548, %v626, %v622
        %v628 = vlaneseq
        %v629 = vshrl.u32 %v628, 7
        %v630 = vsub.s32 %v550, %v629
        %v631 = vrot.slane %v485, %v630
        %v632 = vsel %vm555, %v631, %v627
        %v633 = vlaneseq
        %v634 = vshrl.u32 %v633, 7
        %v635 = vsub.s32 %v531, %v634
        %v636 = vrot.slane %v486, %v635
        %v637 = vlaneseq
        %v638 = vshrl.u32 %v637, 7
        %v639 = vsub.s32 %v536, %v638
        %v640 = vrot.slane %v487, %v639
        %v641 = vsel %vm541, %v640, %v636
        %v642 = vlaneseq
        %v643 = vshrl.u32 %v642, 7
        %v644 = vsub.s32 %v543, %v643
        %v645 = vrot.slane %v488, %v644
        %v646 = vsel %vm548, %v645, %v641
        %v647 = vlaneseq
        %v648 = vshrl.u32 %v647, 7
        %v649 = vsub.s32 %v550, %v648
        %v650 = vrot.slane %v489, %v649
        %v651 = vsel %vm555, %v650, %v646
        %v652 = vlaneseq
        %v653 = vshrl.u32 %v652, 7
        %v654 = vsub.s32 %v531, %v653
        %v655 = vrot.slane %v490, %v654
        %v656 = vlaneseq
        %v657 = vshrl.u32 %v656, 7
        %v658 = vsub.s32 %v536, %v657
        %v659 = vrot.slane %v491, %v658
        %v660 = vsel %vm541, %v659, %v655
        %v661 = vlaneseq
        %v662 = vshrl.u32 %v661, 7
        %v663 = vsub.s32 %v543, %v662
        %v664 = vrot.slane %v492, %v663
        %v665 = vsel %vm548, %v664, %v660
        %v666 = vlaneseq
        %v667 = vshrl.u32 %v666, 7
        %v668 = vsub.s32 %v550, %v667
        %v669 = vrot.slane %v493, %v668
        %v670 = vsel %vm555, %v669, %v665
        %v671 = vlaneseq
        %v672 = vshrl.u32 %v671, 7
        %v673 = vsub.s32 %v531, %v672
        %v674 = vrot.slane %v494, %v673
        %v675 = vlaneseq
        %v676 = vshrl.u32 %v675, 7
        %v677 = vsub.s32 %v536, %v676
        %v678 = vrot.slane %v495, %v677
        %v679 = vsel %vm541, %v678, %v674
        %v680 = vlaneseq
        %v681 = vshrl.u32 %v680, 7
        %v682 = vsub.s32 %v543, %v681
        %v683 = vrot.slane %v496, %v682
        %v684 = vsel %vm548, %v683, %v679
        %v685 = vlaneseq
        %v686 = vshrl.u32 %v685, 7
        %v687 = vsub.s32 %v550, %v686
        %v688 = vrot.slane %v497, %v687
        %v689 = vsel %vm555, %v688, %v684
        %vm690 = vcmask 1041409
        %v691 = vsel %vm690, %v575, %v556
        %vm692 = vcmask 1042434
        %v693 = vsel %vm692, %v594, %v691
        %vm694 = vcmask 1043459
        %v695 = vsel %vm694, %v613, %v693
        %vm696 = vcmask 1044484
        %v697 = vsel %vm696, %v632, %v695
        %vm698 = vcmask 1045509
        %v699 = vsel %vm698, %v651, %v697
        %vm700 = vcmask 1046534
        %v701 = vsel %vm700, %v670, %v699
        %vm702 = vcmask 1047559
        %v703 = vsel %vm702, %v689, %v701
        %vm705 = vcmask 261120
        %v706 = vsel %vm705, %v703, 0.0
        %707 = vadd.xlane.f32.xlu0 %v706
        %v708 = vpop.xlane.xlu0 %707
        %v709 = vrcp.pop 32.0
        %v710 = vmul.f32 %v708, %v709
        %v712 = vlaneseq
        %v713 = vshrl.u32 %v712, 7
        %v714 = vsub.s32 0, %v713
        %v715 = vrot.slane %v710, %v714
        %v716 = vlaneseq
        %v717 = vshrl.u32 %v716, 7
        %v718 = vsub.s32 1, %v717
        %v719 = vrot.slane %v710, %v718
        %v720 = vlaneseq
        %v721 = vshrl.u32 %v720, 7
        %v722 = vsub.s32 2, %v721
        %v723 = vrot.slane %v710, %v722
        %v724 = vlaneseq
        %v725 = vshrl.u32 %v724, 7
        %v726 = vsub.s32 3, %v725
        %v727 = vrot.slane %v710, %v726
        %v728 = vlaneseq
        %v729 = vshrl.u32 %v728, 7
        %v730 = vsub.s32 4, %v729
        %v731 = vrot.slane %v710, %v730
        %v732 = vlaneseq
        %v733 = vshrl.u32 %v732, 7
        %v734 = vsub.s32 5, %v733
        %v735 = vrot.slane %v710, %v734
        %v736 = vlaneseq
        %v737 = vshrl.u32 %v736, 7
        %v738 = vsub.s32 6, %v737
        %v739 = vrot.slane %v710, %v738
        %v740 = vlaneseq
        %v741 = vshrl.u32 %v740, 7
        %v742 = vsub.s32 7, %v741
        %v743 = vrot.slane %v710, %v742
        %v752 = vsub.f32 %v466, %v715
        %v753 = vsub.f32 %v467, %v715
        %v754 = vsub.f32 %v468, %v715
        %v755 = vsub.f32 %v469, %v715
        %v756 = vsub.f32 %v470, %v719
        %v757 = vsub.f32 %v471, %v719
        %v758 = vsub.f32 %v472, %v719
        %v759 = vsub.f32 %v473, %v719
        %v760 = vsub.f32 %v474, %v723
        %v761 = vsub.f32 %v475, %v723
        %v762 = vsub.f32 %v476, %v723
        %v763 = vsub.f32 %v477, %v723
        %v764 = vsub.f32 %v478, %v727
        %v765 = vsub.f32 %v479, %v727
        %v766 = vsub.f32 %v480, %v727
        %v767 = vsub.f32 %v481, %v727
        %v768 = vsub.f32 %v482, %v731
        %v769 = vsub.f32 %v483, %v731
        %v770 = vsub.f32 %v484, %v731
        %v771 = vsub.f32 %v485, %v731
        %v772 = vsub.f32 %v486, %v735
        %v773 = vsub.f32 %v487, %v735
        %v774 = vsub.f32 %v488, %v735
        %v775 = vsub.f32 %v489, %v735
        %v776 = vsub.f32 %v490, %v739
        %v777 = vsub.f32 %v491, %v739
        %v778 = vsub.f32 %v492, %v739
        %v779 = vsub.f32 %v493, %v739
        %v780 = vsub.f32 %v494, %v743
        %v781 = vsub.f32 %v495, %v743
        %v782 = vsub.f32 %v496, %v743
        %v783 = vsub.f32 %v497, %v743
        %v784 = vmul.f32 %v752, %v752
        %v785 = vmul.f32 %v753, %v753
        %v786 = vmul.f32 %v754, %v754
        %v787 = vmul.f32 %v755, %v755
        %v788 = vmul.f32 %v756, %v756
        %v789 = vmul.f32 %v757, %v757
        %v790 = vmul.f32 %v758, %v758
        %v791 = vmul.f32 %v759, %v759
        %v792 = vmul.f32 %v760, %v760
        %v793 = vmul.f32 %v761, %v761
        %v794 = vmul.f32 %v762, %v762
        %v795 = vmul.f32 %v763, %v763
        %v796 = vmul.f32 %v764, %v764
        %v797 = vmul.f32 %v765, %v765
        %v798 = vmul.f32 %v766, %v766
        %v799 = vmul.f32 %v767, %v767
        %v800 = vmul.f32 %v768, %v768
        %v801 = vmul.f32 %v769, %v769
        %v802 = vmul.f32 %v770, %v770
        %v803 = vmul.f32 %v771, %v771
        %v804 = vmul.f32 %v772, %v772
        %v805 = vmul.f32 %v773, %v773
        %v806 = vmul.f32 %v774, %v774
        %v807 = vmul.f32 %v775, %v775
        %v808 = vmul.f32 %v776, %v776
        %v809 = vmul.f32 %v777, %v777
        %v810 = vmul.f32 %v778, %v778
        %v811 = vmul.f32 %v779, %v779
        %v812 = vmul.f32 %v780, %v780
        %v813 = vmul.f32 %v781, %v781
        %v814 = vmul.f32 %v782, %v782
        %v815 = vmul.f32 %v783, %v783
        %848 = vset.pattern.permute.xlu0 0
        %849 = vperm.xlu0 %848, %v784
        %v850 = vpop.permute.xlu0 %849
        %851 = vset.pattern.permute.xlu0 0
        %852 = vperm.xlu0 %851, %v785
        %v853 = vpop.permute.xlu0 %852
        %854 = vset.pattern.permute.xlu0 0
        %855 = vperm.xlu0 %854, %v786
        %v856 = vpop.permute.xlu0 %855
        %857 = vset.pattern.permute.xlu0 0
        %858 = vperm.xlu0 %857, %v787
        %v859 = vpop.permute.xlu0 %858
        %860 = vset.pattern.permute.xlu0 0
        %861 = vperm.xlu0 %860, %v788
        %v862 = vpop.permute.xlu0 %861
        %863 = vset.pattern.permute.xlu0 0
        %864 = vperm.xlu0 %863, %v789
        %v865 = vpop.permute.xlu0 %864
        %866 = vset.pattern.permute.xlu0 0
        %867 = vperm.xlu0 %866, %v790
        %v868 = vpop.permute.xlu0 %867
        %869 = vset.pattern.permute.xlu0 0
        %870 = vperm.xlu0 %869, %v791
        %v871 = vpop.permute.xlu0 %870
        %872 = vset.pattern.permute.xlu0 0
        %873 = vperm.xlu0 %872, %v792
        %v874 = vpop.permute.xlu0 %873
        %875 = vset.pattern.permute.xlu0 0
        %876 = vperm.xlu0 %875, %v793
        %v877 = vpop.permute.xlu0 %876
        %878 = vset.pattern.permute.xlu0 0
        %879 = vperm.xlu0 %878, %v794
        %v880 = vpop.permute.xlu0 %879
        %881 = vset.pattern.permute.xlu0 0
        %882 = vperm.xlu0 %881, %v795
        %v883 = vpop.permute.xlu0 %882
        %884 = vset.pattern.permute.xlu0 0
        %885 = vperm.xlu0 %884, %v796
        %v886 = vpop.permute.xlu0 %885
        %887 = vset.pattern.permute.xlu0 0
        %888 = vperm.xlu0 %887, %v797
        %v889 = vpop.permute.xlu0 %888
        %890 = vset.pattern.permute.xlu0 0
        %891 = vperm.xlu0 %890, %v798
        %v892 = vpop.permute.xlu0 %891
        %893 = vset.pattern.permute.xlu0 0
        %894 = vperm.xlu0 %893, %v799
        %v895 = vpop.permute.xlu0 %894
        %896 = vset.pattern.permute.xlu0 0
        %897 = vperm.xlu0 %896, %v800
        %v898 = vpop.permute.xlu0 %897
        %899 = vset.pattern.permute.xlu0 0
        %900 = vperm.xlu0 %899, %v801
        %v901 = vpop.permute.xlu0 %900
        %902 = vset.pattern.permute.xlu0 0
        %903 = vperm.xlu0 %902, %v802
        %v904 = vpop.permute.xlu0 %903
        %905 = vset.pattern.permute.xlu0 0
        %906 = vperm.xlu0 %905, %v803
        %v907 = vpop.permute.xlu0 %906
        %908 = vset.pattern.permute.xlu0 0
        %909 = vperm.xlu0 %908, %v804
        %v910 = vpop.permute.xlu0 %909
        %911 = vset.pattern.permute.xlu0 0
        %912 = vperm.xlu0 %911, %v805
        %v913 = vpop.permute.xlu0 %912
        %914 = vset.pattern.permute.xlu0 0
        %915 = vperm.xlu0 %914, %v806
        %v916 = vpop.permute.xlu0 %915
        %917 = vset.pattern.permute.xlu0 0
        %918 = vperm.xlu0 %917, %v807
        %v919 = vpop.permute.xlu0 %918
        %920 = vset.pattern.permute.xlu0 0
        %921 = vperm.xlu0 %920, %v808
        %v922 = vpop.permute.xlu0 %921
        %923 = vset.pattern.permute.xlu0 0
        %924 = vperm.xlu0 %923, %v809
        %v925 = vpop.permute.xlu0 %924
        %926 = vset.pattern.permute.xlu0 0
        %927 = vperm.xlu0 %926, %v810
        %v928 = vpop.permute.xlu0 %927
        %929 = vset.pattern.permute.xlu0 0
        %930 = vperm.xlu0 %929, %v811
        %v931 = vpop.permute.xlu0 %930
        %932 = vset.pattern.permute.xlu0 0
        %933 = vperm.xlu0 %932, %v812
        %v934 = vpop.permute.xlu0 %933
        %935 = vset.pattern.permute.xlu0 0
        %936 = vperm.xlu0 %935, %v813
        %v937 = vpop.permute.xlu0 %936
        %938 = vset.pattern.permute.xlu0 0
        %939 = vperm.xlu0 %938, %v814
        %v940 = vpop.permute.xlu0 %939
        %941 = vset.pattern.permute.xlu0 0
        %942 = vperm.xlu0 %941, %v815
        %v943 = vpop.permute.xlu0 %942
        %v944 = vlaneseq
        %v945 = vshrl.u32 %v944, 7
        %v946 = vsub.s32 %v531, %v945
        %v947 = vrot.slane %v850, %v946
        %v948 = vlaneseq
        %v949 = vshrl.u32 %v948, 7
        %v950 = vsub.s32 %v536, %v949
        %v951 = vrot.slane %v853, %v950
        %v952 = vsel %vm541, %v951, %v947
        %v953 = vlaneseq
        %v954 = vshrl.u32 %v953, 7
        %v955 = vsub.s32 %v543, %v954
        %v956 = vrot.slane %v856, %v955
        %v957 = vsel %vm548, %v956, %v952
        %v958 = vlaneseq
        %v959 = vshrl.u32 %v958, 7
        %v960 = vsub.s32 %v550, %v959
        %v961 = vrot.slane %v859, %v960
        %v962 = vsel %vm555, %v961, %v957
        %v963 = vlaneseq
        %v964 = vshrl.u32 %v963, 7
        %v965 = vsub.s32 %v531, %v964
        %v966 = vrot.slane %v862, %v965
        %v967 = vlaneseq
        %v968 = vshrl.u32 %v967, 7
        %v969 = vsub.s32 %v536, %v968
        %v970 = vrot.slane %v865, %v969
        %v971 = vsel %vm541, %v970, %v966
        %v972 = vlaneseq
        %v973 = vshrl.u32 %v972, 7
        %v974 = vsub.s32 %v543, %v973
        %v975 = vrot.slane %v868, %v974
        %v976 = vsel %vm548, %v975, %v971
        %v977 = vlaneseq
        %v978 = vshrl.u32 %v977, 7
        %v979 = vsub.s32 %v550, %v978
        %v980 = vrot.slane %v871, %v979
        %v981 = vsel %vm555, %v980, %v976
        %v982 = vlaneseq
        %v983 = vshrl.u32 %v982, 7
        %v984 = vsub.s32 %v531, %v983
        %v985 = vrot.slane %v874, %v984
        %v986 = vlaneseq
        %v987 = vshrl.u32 %v986, 7
        %v988 = vsub.s32 %v536, %v987
        %v989 = vrot.slane %v877, %v988
        %v990 = vsel %vm541, %v989, %v985
        %v991 = vlaneseq
        %v992 = vshrl.u32 %v991, 7
        %v993 = vsub.s32 %v543, %v992
        %v994 = vrot.slane %v880, %v993
        %v995 = vsel %vm548, %v994, %v990
        %v996 = vlaneseq
        %v997 = vshrl.u32 %v996, 7
        %v998 = vsub.s32 %v550, %v997
        %v999 = vrot.slane %v883, %v998
        %v1000 = vsel %vm555, %v999, %v995
        %v1001 = vlaneseq
        %v1002 = vshrl.u32 %v1001, 7
        %v1003 = vsub.s32 %v531, %v1002
        %v1004 = vrot.slane %v886, %v1003
        %v1005 = vlaneseq
        %v1006 = vshrl.u32 %v1005, 7
        %v1007 = vsub.s32 %v536, %v1006
        %v1008 = vrot.slane %v889, %v1007
        %v1009 = vsel %vm541, %v1008, %v1004
        %v1010 = vlaneseq
        %v1011 = vshrl.u32 %v1010, 7
        %v1012 = vsub.s32 %v543, %v1011
        %v1013 = vrot.slane %v892, %v1012
        %v1014 = vsel %vm548, %v1013, %v1009
        %v1015 = vlaneseq
        %v1016 = vshrl.u32 %v1015, 7
        %v1017 = vsub.s32 %v550, %v1016
        %v1018 = vrot.slane %v895, %v1017
        %v1019 = vsel %vm555, %v1018, %v1014
        %v1020 = vlaneseq
        %v1021 = vshrl.u32 %v1020, 7
        %v1022 = vsub.s32 %v531, %v1021
        %v1023 = vrot.slane %v898, %v1022
        %v1024 = vlaneseq
        %v1025 = vshrl.u32 %v1024, 7
        %v1026 = vsub.s32 %v536, %v1025
        %v1027 = vrot.slane %v901, %v1026
        %v1028 = vsel %vm541, %v1027, %v1023
        %v1029 = vlaneseq
        %v1030 = vshrl.u32 %v1029, 7
        %v1031 = vsub.s32 %v543, %v1030
        %v1032 = vrot.slane %v904, %v1031
        %v1033 = vsel %vm548, %v1032, %v1028
        %v1034 = vlaneseq
        %v1035 = vshrl.u32 %v1034, 7
        %v1036 = vsub.s32 %v550, %v1035
        %v1037 = vrot.slane %v907, %v1036
        %v1038 = vsel %vm555, %v1037, %v1033
        %v1039 = vlaneseq
        %v1040 = vshrl.u32 %v1039, 7
        %v1041 = vsub.s32 %v531, %v1040
        %v1042 = vrot.slane %v910, %v1041
        %v1043 = vlaneseq
        %v1044 = vshrl.u32 %v1043, 7
        %v1045 = vsub.s32 %v536, %v1044
        %v1046 = vrot.slane %v913, %v1045
        %v1047 = vsel %vm541, %v1046, %v1042
        %v1048 = vlaneseq
        %v1049 = vshrl.u32 %v1048, 7
        %v1050 = vsub.s32 %v543, %v1049
        %v1051 = vrot.slane %v916, %v1050
        %v1052 = vsel %vm548, %v1051, %v1047
        %v1053 = vlaneseq
        %v1054 = vshrl.u32 %v1053, 7
        %v1055 = vsub.s32 %v550, %v1054
        %v1056 = vrot.slane %v919, %v1055
        %v1057 = vsel %vm555, %v1056, %v1052
        %v1058 = vlaneseq
        %v1059 = vshrl.u32 %v1058, 7
        %v1060 = vsub.s32 %v531, %v1059
        %v1061 = vrot.slane %v922, %v1060
        %v1062 = vlaneseq
        %v1063 = vshrl.u32 %v1062, 7
        %v1064 = vsub.s32 %v536, %v1063
        %v1065 = vrot.slane %v925, %v1064
        %v1066 = vsel %vm541, %v1065, %v1061
        %v1067 = vlaneseq
        %v1068 = vshrl.u32 %v1067, 7
        %v1069 = vsub.s32 %v543, %v1068
        %v1070 = vrot.slane %v928, %v1069
        %v1071 = vsel %vm548, %v1070, %v1066
        %v1072 = vlaneseq
        %v1073 = vshrl.u32 %v1072, 7
        %v1074 = vsub.s32 %v550, %v1073
        %v1075 = vrot.slane %v931, %v1074
        %v1076 = vsel %vm555, %v1075, %v1071
        %v1077 = vlaneseq
        %v1078 = vshrl.u32 %v1077, 7
        %v1079 = vsub.s32 %v531, %v1078
        %v1080 = vrot.slane %v934, %v1079
        %v1081 = vlaneseq
        %v1082 = vshrl.u32 %v1081, 7
        %v1083 = vsub.s32 %v536, %v1082
        %v1084 = vrot.slane %v937, %v1083
        %v1085 = vsel %vm541, %v1084, %v1080
        %v1086 = vlaneseq
        %v1087 = vshrl.u32 %v1086, 7
        %v1088 = vsub.s32 %v543, %v1087
        %v1089 = vrot.slane %v940, %v1088
        %v1090 = vsel %vm548, %v1089, %v1085
        %v1091 = vlaneseq
        %v1092 = vshrl.u32 %v1091, 7
        %v1093 = vsub.s32 %v550, %v1092
        %v1094 = vrot.slane %v943, %v1093
        %v1095 = vsel %vm555, %v1094, %v1090
        %v1096 = vsel %vm690, %v981, %v962
        %v1097 = vsel %vm692, %v1000, %v1096
        %v1098 = vsel %vm694, %v1019, %v1097
        %v1099 = vsel %vm696, %v1038, %v1098
        %v1100 = vsel %vm698, %v1057, %v1099
        %v1101 = vsel %vm700, %v1076, %v1100
        %v1102 = vsel %vm702, %v1095, %v1101
        %v1104 = vsel %vm705, %v1102, 0.0
        %1105 = vadd.xlane.f32.xlu0 %v1104
        %v1106 = vpop.xlane.xlu0 %1105
        %v1107 = vmul.f32 %v1106, %v709
        %v1108 = vadd.f32 %v1107, 1e-12
        %v1109 = vrsqrt.pop %v1108
        %v1111 = vlaneseq
        %v1112 = vshrl.u32 %v1111, 7
        %v1113 = vsub.s32 0, %v1112
        %v1114 = vrot.slane %v1109, %v1113
        %v1115 = vlaneseq
        %v1116 = vshrl.u32 %v1115, 7
        %v1117 = vsub.s32 1, %v1116
        %v1118 = vrot.slane %v1109, %v1117
        %v1119 = vlaneseq
        %v1120 = vshrl.u32 %v1119, 7
        %v1121 = vsub.s32 2, %v1120
        %v1122 = vrot.slane %v1109, %v1121
        %v1123 = vlaneseq
        %v1124 = vshrl.u32 %v1123, 7
        %v1125 = vsub.s32 3, %v1124
        %v1126 = vrot.slane %v1109, %v1125
        %v1127 = vlaneseq
        %v1128 = vshrl.u32 %v1127, 7
        %v1129 = vsub.s32 4, %v1128
        %v1130 = vrot.slane %v1109, %v1129
        %v1131 = vlaneseq
        %v1132 = vshrl.u32 %v1131, 7
        %v1133 = vsub.s32 5, %v1132
        %v1134 = vrot.slane %v1109, %v1133
        %v1135 = vlaneseq
        %v1136 = vshrl.u32 %v1135, 7
        %v1137 = vsub.s32 6, %v1136
        %v1138 = vrot.slane %v1109, %v1137
        %v1139 = vlaneseq
        %v1140 = vshrl.u32 %v1139, 7
        %v1141 = vsub.s32 7, %v1140
        %v1142 = vrot.slane %v1109, %v1141
        %v1151 = vmul.f32 %v752, %v1114
        %v1152 = vmul.f32 %v753, %v1114
        %v1153 = vmul.f32 %v754, %v1114
        %v1154 = vmul.f32 %v755, %v1114
        %v1155 = vmul.f32 %v756, %v1118
        %v1156 = vmul.f32 %v757, %v1118
        %v1157 = vmul.f32 %v758, %v1118
        %v1158 = vmul.f32 %v759, %v1118
        %v1159 = vmul.f32 %v760, %v1122
        %v1160 = vmul.f32 %v761, %v1122
        %v1161 = vmul.f32 %v762, %v1122
        %v1162 = vmul.f32 %v763, %v1122
        %v1163 = vmul.f32 %v764, %v1126
        %v1164 = vmul.f32 %v765, %v1126
        %v1165 = vmul.f32 %v766, %v1126
        %v1166 = vmul.f32 %v767, %v1126
        %v1167 = vmul.f32 %v768, %v1130
        %v1168 = vmul.f32 %v769, %v1130
        %v1169 = vmul.f32 %v770, %v1130
        %v1170 = vmul.f32 %v771, %v1130
        %v1171 = vmul.f32 %v772, %v1134
        %v1172 = vmul.f32 %v773, %v1134
        %v1173 = vmul.f32 %v774, %v1134
        %v1174 = vmul.f32 %v775, %v1134
        %v1175 = vmul.f32 %v776, %v1138
        %v1176 = vmul.f32 %v777, %v1138
        %v1177 = vmul.f32 %v778, %v1138
        %v1178 = vmul.f32 %v779, %v1138
        %v1179 = vmul.f32 %v780, %v1142
        %v1180 = vmul.f32 %v781, %v1142
        %v1181 = vmul.f32 %v782, %v1142
        %v1182 = vmul.f32 %v783, %v1142
        %v1183 = vld [vmem:[%s1] sm:$0x1]
        %v1185 = vlaneseq
        %v1186 = vshrl.u32 %v1185, 7
        %v1187 = vsub.s32 0, %v1186
        %v1188 = vrot.slane %v1183, %v1187
        %1190 = vbcast.lane.b32.xlu0 %v1188, 256
        %v1191 = vpop.permute.xlu0 %1190
        %s1193 = sor.u32 256, 8
        %1194 = vbcast.lane.b32.xlu0 %v1188, %s1193
        %v1195 = vpop.permute.xlu0 %1194
        %s1197 = sor.u32 256, 16
        %1198 = vbcast.lane.b32.xlu0 %v1188, %s1197
        %v1199 = vpop.permute.xlu0 %1198
        %s1201 = sor.u32 256, 24
        %1202 = vbcast.lane.b32.xlu0 %v1188, %s1201
        %v1203 = vpop.permute.xlu0 %1202
        %v1208 = vmul.f32 %v1151, %v1191
        %v1209 = vmul.f32 %v1152, %v1195
        %v1210 = vmul.f32 %v1153, %v1199
        %v1211 = vmul.f32 %v1154, %v1203
        %v1212 = vmul.f32 %v1155, %v1191
        %v1213 = vmul.f32 %v1156, %v1195
        %v1214 = vmul.f32 %v1157, %v1199
        %v1215 = vmul.f32 %v1158, %v1203
        %v1216 = vmul.f32 %v1159, %v1191
        %v1217 = vmul.f32 %v1160, %v1195
        %v1218 = vmul.f32 %v1161, %v1199
        %v1219 = vmul.f32 %v1162, %v1203
        %v1220 = vmul.f32 %v1163, %v1191
        %v1221 = vmul.f32 %v1164, %v1195
        %v1222 = vmul.f32 %v1165, %v1199
        %v1223 = vmul.f32 %v1166, %v1203
        %v1224 = vmul.f32 %v1167, %v1191
        %v1225 = vmul.f32 %v1168, %v1195
        %v1226 = vmul.f32 %v1169, %v1199
        %v1227 = vmul.f32 %v1170, %v1203
        %v1228 = vmul.f32 %v1171, %v1191
        %v1229 = vmul.f32 %v1172, %v1195
        %v1230 = vmul.f32 %v1173, %v1199
        %v1231 = vmul.f32 %v1174, %v1203
        %v1232 = vmul.f32 %v1175, %v1191
        %v1233 = vmul.f32 %v1176, %v1195
        %v1234 = vmul.f32 %v1177, %v1199
        %v1235 = vmul.f32 %v1178, %v1203
        %v1236 = vmul.f32 %v1179, %v1191
        %v1237 = vmul.f32 %v1180, %v1195
        %v1238 = vmul.f32 %v1181, %v1199
        %v1239 = vmul.f32 %v1182, %v1203
        %v1240 = vld [vmem:[%s2] sm:$0x1]
        %v1242 = vlaneseq
        %v1243 = vshrl.u32 %v1242, 7
        %v1244 = vsub.s32 0, %v1243
        %v1245 = vrot.slane %v1240, %v1244
        %1247 = vbcast.lane.b32.xlu0 %v1245, 256
        %v1248 = vpop.permute.xlu0 %1247
        %s1250 = sor.u32 256, 8
        %1251 = vbcast.lane.b32.xlu0 %v1245, %s1250
        %v1252 = vpop.permute.xlu0 %1251
        %s1254 = sor.u32 256, 16
        %1255 = vbcast.lane.b32.xlu0 %v1245, %s1254
        %v1256 = vpop.permute.xlu0 %1255
        %s1258 = sor.u32 256, 24
        %1259 = vbcast.lane.b32.xlu0 %v1245, %s1258
        %v1260 = vpop.permute.xlu0 %1259
        %v1265 = vadd.f32 %v1208, %v1248
        %v1266 = vadd.f32 %v1209, %v1252
        %v1267 = vadd.f32 %v1210, %v1256
        %v1268 = vadd.f32 %v1211, %v1260
        %v1269 = vadd.f32 %v1212, %v1248
        %v1270 = vadd.f32 %v1213, %v1252
        %v1271 = vadd.f32 %v1214, %v1256
        %v1272 = vadd.f32 %v1215, %v1260
        %v1273 = vadd.f32 %v1216, %v1248
        %v1274 = vadd.f32 %v1217, %v1252
        %v1275 = vadd.f32 %v1218, %v1256
        %v1276 = vadd.f32 %v1219, %v1260
        %v1277 = vadd.f32 %v1220, %v1248
        %v1278 = vadd.f32 %v1221, %v1252
        %v1279 = vadd.f32 %v1222, %v1256
        %v1280 = vadd.f32 %v1223, %v1260
        %v1281 = vadd.f32 %v1224, %v1248
        %v1282 = vadd.f32 %v1225, %v1252
        %v1283 = vadd.f32 %v1226, %v1256
        %v1284 = vadd.f32 %v1227, %v1260
        %v1285 = vadd.f32 %v1228, %v1248
        %v1286 = vadd.f32 %v1229, %v1252
        %v1287 = vadd.f32 %v1230, %v1256
        %v1288 = vadd.f32 %v1231, %v1260
        %v1289 = vadd.f32 %v1232, %v1248
        %v1290 = vadd.f32 %v1233, %v1252
        %v1291 = vadd.f32 %v1234, %v1256
        %v1292 = vadd.f32 %v1235, %v1260
        %v1293 = vadd.f32 %v1236, %v1248
        %v1294 = vadd.f32 %v1237, %v1252
        %v1295 = vadd.f32 %v1238, %v1256
        %v1296 = vadd.f32 %v1239, %v1260
        %v1297 = vld [vmem:[%s3] sm:$0xff]
        %v1298 = vld [vmem:[%s3 + $0x8] sm:$0xff]
        %v1299 = vld [vmem:[%s3 + $0x10] sm:$0xff]
        %v1300 = vld [vmem:[%s3 + $0x18] sm:$0xff]
        %v1301 = vld [vmem:[%s3 + $0x20] sm:$0xff]
        %v1302 = vld [vmem:[%s3 + $0x28] sm:$0xff]
        %v1303 = vld [vmem:[%s3 + $0x30] sm:$0xff]
        %v1304 = vld [vmem:[%s3 + $0x38] sm:$0xff]
        %v1305 = vld [vmem:[%s4] sm:$0x3]
        %v1307 = vlaneseq
        %v1308 = vshrl.u32 %v1307, 7
        %v1309 = vsub.s32 0, %v1308
        %v1310 = vrot.slane %v1305, %v1309
        %v1311 = vlaneseq
        %v1312 = vshrl.u32 %v1311, 7
        %v1313 = vsub.s32 1, %v1312
        %v1314 = vrot.slane %v1305, %v1313
        %1349 = vset.pattern.permute.xlu0 0
        %1350 = vperm.xlu0 %1349, %v1265
        %v1351 = vpop.permute.xlu0 %1350
        %1352 = vset.pattern.permute.xlu0 0
        %1353 = vperm.xlu0 %1352, %v1266
        %v1354 = vpop.permute.xlu0 %1353
        %1355 = vset.pattern.permute.xlu0 0
        %1356 = vperm.xlu0 %1355, %v1267
        %v1357 = vpop.permute.xlu0 %1356
        %1358 = vset.pattern.permute.xlu0 0
        %1359 = vperm.xlu0 %1358, %v1268
        %v1360 = vpop.permute.xlu0 %1359
        %1361 = vset.pattern.permute.xlu0 0
        %1362 = vperm.xlu0 %1361, %v1269
        %v1363 = vpop.permute.xlu0 %1362
        %1364 = vset.pattern.permute.xlu0 0
        %1365 = vperm.xlu0 %1364, %v1270
        %v1366 = vpop.permute.xlu0 %1365
        %1367 = vset.pattern.permute.xlu0 0
        %1368 = vperm.xlu0 %1367, %v1271
        %v1369 = vpop.permute.xlu0 %1368
        %1370 = vset.pattern.permute.xlu0 0
        %1371 = vperm.xlu0 %1370, %v1272
        %v1372 = vpop.permute.xlu0 %1371
        %1373 = vset.pattern.permute.xlu0 0
        %1374 = vperm.xlu0 %1373, %v1273
        %v1375 = vpop.permute.xlu0 %1374
        %1376 = vset.pattern.permute.xlu0 0
        %1377 = vperm.xlu0 %1376, %v1274
        %v1378 = vpop.permute.xlu0 %1377
        %1379 = vset.pattern.permute.xlu0 0
        %1380 = vperm.xlu0 %1379, %v1275
        %v1381 = vpop.permute.xlu0 %1380
        %1382 = vset.pattern.permute.xlu0 0
        %1383 = vperm.xlu0 %1382, %v1276
        %v1384 = vpop.permute.xlu0 %1383
        %1385 = vset.pattern.permute.xlu0 0
        %1386 = vperm.xlu0 %1385, %v1277
        %v1387 = vpop.permute.xlu0 %1386
        %1388 = vset.pattern.permute.xlu0 0
        %1389 = vperm.xlu0 %1388, %v1278
        %v1390 = vpop.permute.xlu0 %1389
        %1391 = vset.pattern.permute.xlu0 0
        %1392 = vperm.xlu0 %1391, %v1279
        %v1393 = vpop.permute.xlu0 %1392
        %1394 = vset.pattern.permute.xlu0 0
        %1395 = vperm.xlu0 %1394, %v1280
        %v1396 = vpop.permute.xlu0 %1395
        %1397 = vset.pattern.permute.xlu0 0
        %1398 = vperm.xlu0 %1397, %v1281
        %v1399 = vpop.permute.xlu0 %1398
        %1400 = vset.pattern.permute.xlu0 0
        %1401 = vperm.xlu0 %1400, %v1282
        %v1402 = vpop.permute.xlu0 %1401
        %1403 = vset.pattern.permute.xlu0 0
        %1404 = vperm.xlu0 %1403, %v1283
        %v1405 = vpop.permute.xlu0 %1404
        %1406 = vset.pattern.permute.xlu0 0
        %1407 = vperm.xlu0 %1406, %v1284
        %v1408 = vpop.permute.xlu0 %1407
        %1409 = vset.pattern.permute.xlu0 0
        %1410 = vperm.xlu0 %1409, %v1285
        %v1411 = vpop.permute.xlu0 %1410
        %1412 = vset.pattern.permute.xlu0 0
        %1413 = vperm.xlu0 %1412, %v1286
        %v1414 = vpop.permute.xlu0 %1413
        %1415 = vset.pattern.permute.xlu0 0
        %1416 = vperm.xlu0 %1415, %v1287
        %v1417 = vpop.permute.xlu0 %1416
        %1418 = vset.pattern.permute.xlu0 0
        %1419 = vperm.xlu0 %1418, %v1288
        %v1420 = vpop.permute.xlu0 %1419
        %1421 = vset.pattern.permute.xlu0 0
        %1422 = vperm.xlu0 %1421, %v1289
        %v1423 = vpop.permute.xlu0 %1422
        %1424 = vset.pattern.permute.xlu0 0
        %1425 = vperm.xlu0 %1424, %v1290
        %v1426 = vpop.permute.xlu0 %1425
        %1427 = vset.pattern.permute.xlu0 0
        %1428 = vperm.xlu0 %1427, %v1291
        %v1429 = vpop.permute.xlu0 %1428
        %1430 = vset.pattern.permute.xlu0 0
        %1431 = vperm.xlu0 %1430, %v1292
        %v1432 = vpop.permute.xlu0 %1431
        %1433 = vset.pattern.permute.xlu0 0
        %1434 = vperm.xlu0 %1433, %v1293
        %v1435 = vpop.permute.xlu0 %1434
        %1436 = vset.pattern.permute.xlu0 0
        %1437 = vperm.xlu0 %1436, %v1294
        %v1438 = vpop.permute.xlu0 %1437
        %1439 = vset.pattern.permute.xlu0 0
        %1440 = vperm.xlu0 %1439, %v1295
        %v1441 = vpop.permute.xlu0 %1440
        %1442 = vset.pattern.permute.xlu0 0
        %1443 = vperm.xlu0 %1442, %v1296
        %v1444 = vpop.permute.xlu0 %1443
        %v1445 = vlaneseq
        %v1446 = vshrl.u32 %v1445, 7
        %v1447 = vsub.s32 %v531, %v1446
        %v1448 = vrot.slane %v1351, %v1447
        %v1449 = vlaneseq
        %v1450 = vshrl.u32 %v1449, 7
        %v1451 = vsub.s32 %v536, %v1450
        %v1452 = vrot.slane %v1354, %v1451
        %v1453 = vsel %vm541, %v1452, %v1448
        %v1454 = vlaneseq
        %v1455 = vshrl.u32 %v1454, 7
        %v1456 = vsub.s32 %v543, %v1455
        %v1457 = vrot.slane %v1357, %v1456
        %v1458 = vsel %vm548, %v1457, %v1453
        %v1459 = vlaneseq
        %v1460 = vshrl.u32 %v1459, 7
        %v1461 = vsub.s32 %v550, %v1460
        %v1462 = vrot.slane %v1360, %v1461
        %v1463 = vsel %vm555, %v1462, %v1458
        %v1464 = vlaneseq
        %v1465 = vshrl.u32 %v1464, 7
        %v1466 = vsub.s32 %v531, %v1465
        %v1467 = vrot.slane %v1363, %v1466
        %v1468 = vlaneseq
        %v1469 = vshrl.u32 %v1468, 7
        %v1470 = vsub.s32 %v536, %v1469
        %v1471 = vrot.slane %v1366, %v1470
        %v1472 = vsel %vm541, %v1471, %v1467
        %v1473 = vlaneseq
        %v1474 = vshrl.u32 %v1473, 7
        %v1475 = vsub.s32 %v543, %v1474
        %v1476 = vrot.slane %v1369, %v1475
        %v1477 = vsel %vm548, %v1476, %v1472
        %v1478 = vlaneseq
        %v1479 = vshrl.u32 %v1478, 7
        %v1480 = vsub.s32 %v550, %v1479
        %v1481 = vrot.slane %v1372, %v1480
        %v1482 = vsel %vm555, %v1481, %v1477
        %v1483 = vlaneseq
        %v1484 = vshrl.u32 %v1483, 7
        %v1485 = vsub.s32 %v531, %v1484
        %v1486 = vrot.slane %v1375, %v1485
        %v1487 = vlaneseq
        %v1488 = vshrl.u32 %v1487, 7
        %v1489 = vsub.s32 %v536, %v1488
        %v1490 = vrot.slane %v1378, %v1489
        %v1491 = vsel %vm541, %v1490, %v1486
        %v1492 = vlaneseq
        %v1493 = vshrl.u32 %v1492, 7
        %v1494 = vsub.s32 %v543, %v1493
        %v1495 = vrot.slane %v1381, %v1494
        %v1496 = vsel %vm548, %v1495, %v1491
        %v1497 = vlaneseq
        %v1498 = vshrl.u32 %v1497, 7
        %v1499 = vsub.s32 %v550, %v1498
        %v1500 = vrot.slane %v1384, %v1499
        %v1501 = vsel %vm555, %v1500, %v1496
        %v1502 = vlaneseq
        %v1503 = vshrl.u32 %v1502, 7
        %v1504 = vsub.s32 %v531, %v1503
        %v1505 = vrot.slane %v1387, %v1504
        %v1506 = vlaneseq
        %v1507 = vshrl.u32 %v1506, 7
        %v1508 = vsub.s32 %v536, %v1507
        %v1509 = vrot.slane %v1390, %v1508
        %v1510 = vsel %vm541, %v1509, %v1505
        %v1511 = vlaneseq
        %v1512 = vshrl.u32 %v1511, 7
        %v1513 = vsub.s32 %v543, %v1512
        %v1514 = vrot.slane %v1393, %v1513
        %v1515 = vsel %vm548, %v1514, %v1510
        %v1516 = vlaneseq
        %v1517 = vshrl.u32 %v1516, 7
        %v1518 = vsub.s32 %v550, %v1517
        %v1519 = vrot.slane %v1396, %v1518
        %v1520 = vsel %vm555, %v1519, %v1515
        %v1521 = vlaneseq
        %v1522 = vshrl.u32 %v1521, 7
        %v1523 = vsub.s32 %v531, %v1522
        %v1524 = vrot.slane %v1399, %v1523
        %v1525 = vlaneseq
        %v1526 = vshrl.u32 %v1525, 7
        %v1527 = vsub.s32 %v536, %v1526
        %v1528 = vrot.slane %v1402, %v1527
        %v1529 = vsel %vm541, %v1528, %v1524
        %v1530 = vlaneseq
        %v1531 = vshrl.u32 %v1530, 7
        %v1532 = vsub.s32 %v543, %v1531
        %v1533 = vrot.slane %v1405, %v1532
        %v1534 = vsel %vm548, %v1533, %v1529
        %v1535 = vlaneseq
        %v1536 = vshrl.u32 %v1535, 7
        %v1537 = vsub.s32 %v550, %v1536
        %v1538 = vrot.slane %v1408, %v1537
        %v1539 = vsel %vm555, %v1538, %v1534
        %v1540 = vlaneseq
        %v1541 = vshrl.u32 %v1540, 7
        %v1542 = vsub.s32 %v531, %v1541
        %v1543 = vrot.slane %v1411, %v1542
        %v1544 = vlaneseq
        %v1545 = vshrl.u32 %v1544, 7
        %v1546 = vsub.s32 %v536, %v1545
        %v1547 = vrot.slane %v1414, %v1546
        %v1548 = vsel %vm541, %v1547, %v1543
        %v1549 = vlaneseq
        %v1550 = vshrl.u32 %v1549, 7
        %v1551 = vsub.s32 %v543, %v1550
        %v1552 = vrot.slane %v1417, %v1551
        %v1553 = vsel %vm548, %v1552, %v1548
        %v1554 = vlaneseq
        %v1555 = vshrl.u32 %v1554, 7
        %v1556 = vsub.s32 %v550, %v1555
        %v1557 = vrot.slane %v1420, %v1556
        %v1558 = vsel %vm555, %v1557, %v1553
        %v1559 = vlaneseq
        %v1560 = vshrl.u32 %v1559, 7
        %v1561 = vsub.s32 %v531, %v1560
        %v1562 = vrot.slane %v1423, %v1561
        %v1563 = vlaneseq
        %v1564 = vshrl.u32 %v1563, 7
        %v1565 = vsub.s32 %v536, %v1564
        %v1566 = vrot.slane %v1426, %v1565
        %v1567 = vsel %vm541, %v1566, %v1562
        %v1568 = vlaneseq
        %v1569 = vshrl.u32 %v1568, 7
        %v1570 = vsub.s32 %v543, %v1569
        %v1571 = vrot.slane %v1429, %v1570
        %v1572 = vsel %vm548, %v1571, %v1567
        %v1573 = vlaneseq
        %v1574 = vshrl.u32 %v1573, 7
        %v1575 = vsub.s32 %v550, %v1574
        %v1576 = vrot.slane %v1432, %v1575
        %v1577 = vsel %vm555, %v1576, %v1572
        %v1578 = vlaneseq
        %v1579 = vshrl.u32 %v1578, 7
        %v1580 = vsub.s32 %v531, %v1579
        %v1581 = vrot.slane %v1435, %v1580
        %v1582 = vlaneseq
        %v1583 = vshrl.u32 %v1582, 7
        %v1584 = vsub.s32 %v536, %v1583
        %v1585 = vrot.slane %v1438, %v1584
        %v1586 = vsel %vm541, %v1585, %v1581
        %v1587 = vlaneseq
        %v1588 = vshrl.u32 %v1587, 7
        %v1589 = vsub.s32 %v543, %v1588
        %v1590 = vrot.slane %v1441, %v1589
        %v1591 = vsel %vm548, %v1590, %v1586
        %v1592 = vlaneseq
        %v1593 = vshrl.u32 %v1592, 7
        %v1594 = vsub.s32 %v550, %v1593
        %v1595 = vrot.slane %v1444, %v1594
        %v1596 = vsel %vm555, %v1595, %v1591
        %v1597 = vsel %vm690, %v1482, %v1463
        %v1598 = vsel %vm692, %v1501, %v1597
        %v1599 = vsel %vm694, %v1520, %v1598
        %v1600 = vsel %vm696, %v1539, %v1599
        %v1601 = vsel %vm698, %v1558, %v1600
        %v1602 = vsel %vm700, %v1577, %v1601
        %v1603 = vsel %vm702, %v1596, %v1602
        %v1604 = vsel %vm705, %v1603, 0
        %1606 = vmatprep.subr.mxu0 %v1298
        %1607 = vmatpush1.msra.mxu0 %v1297
        %1608 = vmatprep.subr.mxu0 %v1300
        %1609 = vmatpush1.msra.mxu0 %v1299
        %1610 = vmatprep.subr.mxu0 %v1302
        %1611 = vmatpush1.msra.mxu0 %v1301
        %1612 = vmatprep.subr.mxu0 %v1304
        %1613 = vmatpush1.msra.mxu0 %v1303
        %1614 = vmatprep.subr.mxu0 0.0
        %1615 = vmatpush1.msra.mxu0 0.0
        %1616 = vmatprep.subr.mxu0 0.0
        %1617 = vmatpush1.msra.mxu0 0.0
        %1618 = vmatprep.subr.mxu0 0.0
        %1619 = vmatpush1.msra.mxu0 0.0
        %1620 = vmatprep.subr.mxu0 0.0
        %1621 = vmatpush1.msra.mxu0 0.0
        %1622 = vmatprep.subr.mxu0 0.0
        %1623 = vmatpush1.msra.mxu0 0.0
        %1624 = vmatprep.subr.mxu0 0.0
        %1625 = vmatpush1.msra.mxu0 0.0
        %1626 = vmatprep.subr.mxu0 0.0
        %1627 = vmatpush1.msra.mxu0 0.0
        %1628 = vmatprep.subr.mxu0 0.0
        %1629 = vmatpush1.msra.mxu0 0.0
        %1630 = vmatprep.subr.mxu0 0.0
        %1631 = vmatpush1.msra.mxu0 0.0
        %1632 = vmatprep.subr.mxu0 0.0
        %1633 = vmatpush1.msra.mxu0 0.0
        %1634 = vmatprep.subr.mxu0 0.0
        %1635 = vmatpush1.msra.mxu0 0.0
        %1636 = vmatprep.subr.mxu0 0.0
        %1637 = vmatpush1.msra.mxu0 0.0
        %1638 = vmatprep.subr.mxu0 0.0
        %1639 = vmatpush1.msra.mxu0 0.0
        %1640 = vmatprep.subr.mxu0 0.0
        %1641 = vmatpush1.msra.mxu0 0.0
        %1642 = vmatprep.subr.mxu0 0.0
        %1643 = vmatpush1.msra.mxu0 0.0
        %1644 = vmatprep.subr.mxu0 0.0
        %1645 = vmatpush1.msra.mxu0 0.0
        %1646 = vmatprep.subr.mxu0 0.0
        %1647 = vmatpush1.msra.mxu0 0.0
        %1648 = vmatprep.subr.mxu0 0.0
        %1649 = vmatpush1.msra.mxu0 0.0
        %1650 = vmatprep.subr.mxu0 0.0
        %1651 = vmatpush1.msra.mxu0 0.0
        %1652 = vmatprep.subr.mxu0 0.0
        %1653 = vmatpush1.msra.mxu0 0.0
        %1654 = vmatprep.subr.mxu0 0.0
        %1655 = vmatpush1.msra.mxu0 0.0
        %1656 = vmatprep.subr.mxu0 0.0
        %1657 = vmatpush1.msra.mxu0 0.0
        %1658 = vmatprep.subr.mxu0 0.0
        %1659 = vmatpush1.msra.mxu0 0.0
        %1660 = vmatprep.subr.mxu0 0.0
        %1661 = vmatpush1.msra.mxu0 0.0
        %1662 = vmatprep.subr.mxu0 0.0
        %1663 = vmatpush1.msra.mxu0 0.0
        %1664 = vmatprep.subr.mxu0 0.0
        %1665 = vmatpush1.msra.mxu0 0.0
        %1666 = vmatprep.subr.mxu0 0.0
        %1667 = vmatpush1.msra.mxu0 0.0
        %1668 = vmatprep.subr.mxu0 0.0
        %1669 = vmatpush1.msra.mxu0 0.0
        %1670 = vmatprep.mubr.f32.mxu0 0.0
        %1671 = vmatmul.mubr.f32.gmra.mrb[0].mxu0 %v1604
        %v1672 = vpop.f32.mrb[0].mxu0
        %v1673 = vadd.f32 %v1310, %v1672
        %v1674 = vpop.f32.mrb[0].mxu0
        %v1675 = vadd.f32 %v1314, %v1674
        %1676 = vdwg.mxu0
        %vm1677 = vcmp.ge.f32.partialorder %v1673, 0.0
        %vm1678 = vcmp.ge.f32.partialorder %v1675, 0.0
        %v1679 = vmul.f32 %v1673, 0.01
        %v1680 = vmul.f32 %v1675, 0.01
        %v1681 = vsel %vm1677, %v1673, %v1679
        %v1682 = vsel %vm1678, %v1675, %v1680
        %v1683 = vld [vmem:[%s5] sm:$0xff]
        %v1684 = vld [vmem:[%s5 + $0x8] sm:$0xff]
        %v1685 = vld [vmem:[%s5 + $0x10] sm:$0xff]
        %v1686 = vld [vmem:[%s5 + $0x18] sm:$0xff]
        %v1687 = vld [vmem:[%s5 + $0x20] sm:$0xff]
        %v1688 = vld [vmem:[%s5 + $0x28] sm:$0xff]
        %v1689 = vld [vmem:[%s5 + $0x30] sm:$0xff]
        %v1690 = vld [vmem:[%s5 + $0x38] sm:$0xff]
        %v1691 = vld [vmem:[%s5 + $0x40] sm:$0xff]
        %v1692 = vld [vmem:[%s5 + $0x48] sm:$0xff]
        %v1693 = vld [vmem:[%s5 + $0x50] sm:$0xff]
        %v1694 = vld [vmem:[%s5 + $0x58] sm:$0xff]
        %v1695 = vld [vmem:[%s5 + $0x60] sm:$0xff]
        %v1696 = vld [vmem:[%s5 + $0x68] sm:$0xff]
        %v1697 = vld [vmem:[%s5 + $0x70] sm:$0xff]
        %v1698 = vld [vmem:[%s5 + $0x78] sm:$0xff]
        %v1699 = vld [vmem:[%s5 + $0x80] sm:$0xff]
        %v1700 = vld [vmem:[%s5 + $0x88] sm:$0xff]
        %v1701 = vld [vmem:[%s5 + $0x90] sm:$0xff]
        %v1702 = vld [vmem:[%s5 + $0x98] sm:$0xff]
        %v1703 = vld [vmem:[%s5 + $0xa0] sm:$0xff]
        %v1704 = vld [vmem:[%s5 + $0xa8] sm:$0xff]
        %v1705 = vld [vmem:[%s5 + $0xb0] sm:$0xff]
        %v1706 = vld [vmem:[%s5 + $0xb8] sm:$0xff]
        %v1707 = vld [vmem:[%s5 + $0xc0] sm:$0xff]
        %v1708 = vld [vmem:[%s5 + $0xc8] sm:$0xff]
        %v1709 = vld [vmem:[%s5 + $0xd0] sm:$0xff]
        %v1710 = vld [vmem:[%s5 + $0xd8] sm:$0xff]
        %v1711 = vld [vmem:[%s5 + $0xe0] sm:$0xff]
        %v1712 = vld [vmem:[%s5 + $0xe8] sm:$0xff]
        %v1713 = vld [vmem:[%s5 + $0xf0] sm:$0xff]
        %v1714 = vld [vmem:[%s5 + $0xf8] sm:$0xff]
        %v1715 = vld [vmem:[%s6] sm:$0x1]
        %v1717 = vlaneseq
        %v1718 = vshrl.u32 %v1717, 7
        %v1719 = vsub.s32 0, %v1718
        %v1720 = vrot.slane %v1715, %v1719
        %1722 = vmatprep.subr.mxu0 0.0
        %1723 = vmatpush1.msra.mxu0 %v1683
        %1724 = vmatprep.subr.mxu0 0.0
        %1725 = vmatpush1.msra.mxu0 %v1684
        %1726 = vmatprep.subr.mxu0 0.0
        %1727 = vmatpush1.msra.mxu0 %v1685
        %1728 = vmatprep.subr.mxu0 0.0
        %1729 = vmatpush1.msra.mxu0 %v1686
        %1730 = vmatprep.subr.mxu0 0.0
        %1731 = vmatpush1.msra.mxu0 %v1687
        %1732 = vmatprep.subr.mxu0 0.0
        %1733 = vmatpush1.msra.mxu0 %v1688
        %1734 = vmatprep.subr.mxu0 0.0
        %1735 = vmatpush1.msra.mxu0 %v1689
        %1736 = vmatprep.subr.mxu0 0.0
        %1737 = vmatpush1.msra.mxu0 %v1690
        %1738 = vmatprep.subr.mxu0 0.0
        %1739 = vmatpush1.msra.mxu0 %v1691
        %1740 = vmatprep.subr.mxu0 0.0
        %1741 = vmatpush1.msra.mxu0 %v1692
        %1742 = vmatprep.subr.mxu0 0.0
        %1743 = vmatpush1.msra.mxu0 %v1693
        %1744 = vmatprep.subr.mxu0 0.0
        %1745 = vmatpush1.msra.mxu0 %v1694
        %1746 = vmatprep.subr.mxu0 0.0
        %1747 = vmatpush1.msra.mxu0 %v1695
        %1748 = vmatprep.subr.mxu0 0.0
        %1749 = vmatpush1.msra.mxu0 %v1696
        %1750 = vmatprep.subr.mxu0 0.0
        %1751 = vmatpush1.msra.mxu0 %v1697
        %1752 = vmatprep.subr.mxu0 0.0
        %1753 = vmatpush1.msra.mxu0 %v1698
        %1754 = vmatprep.subr.mxu0 0.0
        %1755 = vmatpush1.msra.mxu0 %v1699
        %1756 = vmatprep.subr.mxu0 0.0
        %1757 = vmatpush1.msra.mxu0 %v1700
        %1758 = vmatprep.subr.mxu0 0.0
        %1759 = vmatpush1.msra.mxu0 %v1701
        %1760 = vmatprep.subr.mxu0 0.0
        %1761 = vmatpush1.msra.mxu0 %v1702
        %1762 = vmatprep.subr.mxu0 0.0
        %1763 = vmatpush1.msra.mxu0 %v1703
        %1764 = vmatprep.subr.mxu0 0.0
        %1765 = vmatpush1.msra.mxu0 %v1704
        %1766 = vmatprep.subr.mxu0 0.0
        %1767 = vmatpush1.msra.mxu0 %v1705
        %1768 = vmatprep.subr.mxu0 0.0
        %1769 = vmatpush1.msra.mxu0 %v1706
        %1770 = vmatprep.subr.mxu0 0.0
        %1771 = vmatpush1.msra.mxu0 %v1707
        %1772 = vmatprep.subr.mxu0 0.0
        %1773 = vmatpush1.msra.mxu0 %v1708
        %1774 = vmatprep.subr.mxu0 0.0
        %1775 = vmatpush1.msra.mxu0 %v1709
        %1776 = vmatprep.subr.mxu0 0.0
        %1777 = vmatpush1.msra.mxu0 %v1710
        %1778 = vmatprep.subr.mxu0 0.0
        %1779 = vmatpush1.msra.mxu0 %v1711
        %1780 = vmatprep.subr.mxu0 0.0
        %1781 = vmatpush1.msra.mxu0 %v1712
        %1782 = vmatprep.subr.mxu0 0.0
        %1783 = vmatpush1.msra.mxu0 %v1713
        %1784 = vmatprep.subr.mxu0 0.0
        %1785 = vmatpush1.msra.mxu0 %v1714
        %1786 = vmatprep.mubr.f32.mxu0 %v1682
        %1787 = vmatmul.mubr.f32.gmra.mrb[0].mxu0 %v1681
        %v1788 = vpop.f32.mrb[0].mxu0
        %v1789 = vadd.f32 %v1720, %v1788
        %v1790 = vpop.f32.mrb[0].mxu0
        %1791 = vdwg.mxu0
        %vm1792 = vcmp.ge.f32.partialorder %v1789, 0.0
        %v1793 = vmul.f32 %v1789, 0.01
        %v1794 = vsel %vm1792, %v1789, %v1793
        %v1795 = vld [vmem:[%s7] sm:$0xff]
        %v1796 = vld [vmem:[%s7 + $0x8] sm:$0xff]
        %v1797 = vld [vmem:[%s7 + $0x10] sm:$0xff]
        %v1798 = vld [vmem:[%s7 + $0x18] sm:$0xff]
        %v1799 = vld [vmem:[%s7 + $0x20] sm:$0xff]
        %v1800 = vld [vmem:[%s7 + $0x28] sm:$0xff]
        %v1801 = vld [vmem:[%s7 + $0x30] sm:$0xff]
        %v1802 = vld [vmem:[%s7 + $0x38] sm:$0xff]
        %v1803 = vld [vmem:[%s7 + $0x40] sm:$0xff]
        %v1804 = vld [vmem:[%s7 + $0x48] sm:$0xff]
        %v1805 = vld [vmem:[%s7 + $0x50] sm:$0xff]
        %v1806 = vld [vmem:[%s7 + $0x58] sm:$0xff]
        %v1807 = vld [vmem:[%s7 + $0x60] sm:$0xff]
        %v1808 = vld [vmem:[%s7 + $0x68] sm:$0xff]
        %v1809 = vld [vmem:[%s7 + $0x70] sm:$0xff]
        %v1810 = vld [vmem:[%s7 + $0x78] sm:$0xff]
        %v1811 = vld [vmem:[%s8] sm:$0x1]
        %v1813 = vlaneseq
        %v1814 = vshrl.u32 %v1813, 7
        %v1815 = vsub.s32 0, %v1814
        %v1816 = vrot.slane %v1811, %v1815
        %1818 = vmatprep.subr.mxu0 0.0
        %1819 = vmatpush1.msra.mxu0 %v1795
        %1820 = vmatprep.subr.mxu0 0.0
        %1821 = vmatpush1.msra.mxu0 %v1796
        %1822 = vmatprep.subr.mxu0 0.0
        %1823 = vmatpush1.msra.mxu0 %v1797
        %1824 = vmatprep.subr.mxu0 0.0
        %1825 = vmatpush1.msra.mxu0 %v1798
        %1826 = vmatprep.subr.mxu0 0.0
        %1827 = vmatpush1.msra.mxu0 %v1799
        %1828 = vmatprep.subr.mxu0 0.0
        %1829 = vmatpush1.msra.mxu0 %v1800
        %1830 = vmatprep.subr.mxu0 0.0
        %1831 = vmatpush1.msra.mxu0 %v1801
        %1832 = vmatprep.subr.mxu0 0.0
        %1833 = vmatpush1.msra.mxu0 %v1802
        %1834 = vmatprep.subr.mxu0 0.0
        %1835 = vmatpush1.msra.mxu0 %v1803
        %1836 = vmatprep.subr.mxu0 0.0
        %1837 = vmatpush1.msra.mxu0 %v1804
        %1838 = vmatprep.subr.mxu0 0.0
        %1839 = vmatpush1.msra.mxu0 %v1805
        %1840 = vmatprep.subr.mxu0 0.0
        %1841 = vmatpush1.msra.mxu0 %v1806
        %1842 = vmatprep.subr.mxu0 0.0
        %1843 = vmatpush1.msra.mxu0 %v1807
        %1844 = vmatprep.subr.mxu0 0.0
        %1845 = vmatpush1.msra.mxu0 %v1808
        %1846 = vmatprep.subr.mxu0 0.0
        %1847 = vmatpush1.msra.mxu0 %v1809
        %1848 = vmatprep.subr.mxu0 0.0
        %1849 = vmatpush1.msra.mxu0 %v1810
        %1850 = vmatprep.subr.mxu0 0.0
        %1851 = vmatpush1.msra.mxu0 0.0
        %1852 = vmatprep.subr.mxu0 0.0
        %1853 = vmatpush1.msra.mxu0 0.0
        %1854 = vmatprep.subr.mxu0 0.0
        %1855 = vmatpush1.msra.mxu0 0.0
        %1856 = vmatprep.subr.mxu0 0.0
        %1857 = vmatpush1.msra.mxu0 0.0
        %1858 = vmatprep.subr.mxu0 0.0
        %1859 = vmatpush1.msra.mxu0 0.0
        %1860 = vmatprep.subr.mxu0 0.0
        %1861 = vmatpush1.msra.mxu0 0.0
        %1862 = vmatprep.subr.mxu0 0.0
        %1863 = vmatpush1.msra.mxu0 0.0
        %1864 = vmatprep.subr.mxu0 0.0
        %1865 = vmatpush1.msra.mxu0 0.0
        %1866 = vmatprep.subr.mxu0 0.0
        %1867 = vmatpush1.msra.mxu0 0.0
        %1868 = vmatprep.subr.mxu0 0.0
        %1869 = vmatpush1.msra.mxu0 0.0
        %1870 = vmatprep.subr.mxu0 0.0
        %1871 = vmatpush1.msra.mxu0 0.0
        %1872 = vmatprep.subr.mxu0 0.0
        %1873 = vmatpush1.msra.mxu0 0.0
        %1874 = vmatprep.subr.mxu0 0.0
        %1875 = vmatpush1.msra.mxu0 0.0
        %1876 = vmatprep.subr.mxu0 0.0
        %1877 = vmatpush1.msra.mxu0 0.0
        %1878 = vmatprep.subr.mxu0 0.0
        %1879 = vmatpush1.msra.mxu0 0.0
        %1880 = vmatprep.subr.mxu0 0.0
        %1881 = vmatpush1.msra.mxu0 0.0
        %1882 = vmatprep.mubr.f32.mxu0 0.0
        %1883 = vmatmul.mubr.f32.gmra.mrb[0].mxu0 %v1794
        %v1884 = vpop.f32.mrb[0].mxu0
        %v1885 = vadd.f32 %v1816, %v1884
        %v1886 = vpop.f32.mrb[0].mxu0
        %1887 = vdwg.mxu0
        %1888 = vst [vmem:[%s328] sm:$0xff] %v1885
        %s1889 = sand.u32 %s225, 1
        %s1890 = scalar_lea.sflag [#allocation3], %s1889
        %s1891 = sand.u32 %s225, 1
        %s1892 = smul.addr %s1891, 8
        %s1893 = scalar_lea.vmem [#allocation2], %s1892
        // Predicated region
        $region57: #{tpu_custom_call.1} parent=55 // pred_check
          %p1894 = pneg %p235
        $region58: #{tpu_custom_call.1} parent=55 // pred_check_branch
          %1896 = sbr.rel (%p1894) target = $region60
        $region59: #{tpu_custom_call.1} parent=55 // pred_region
          %s1898 = ssub.s32 128, 128
          %1899 = vsyncadd %s1890, %s1898
          %s1900 = smul.addr %s23, 128
          %s1901 = scalar_lea.hbm %s9, %s1900
          %s1903 = sshll.u32 %s1893, 4
          %s1904 = int_to_ptr.vmem [resolvable:$true] %s1903
          %1906 = dma.vmem_to_hbm [thread:$0]  %s1904, 128, %s1901, %s1890
        $region60: #{tpu_custom_call.1} parent=55 // pred_fallthru
          _
      $region56: #{tpu_custom_call.1} parent=5 // pred_fallthru
        _
      %p1907 = scmp.le.s32.totalorder 2, %s18
      // Predicated region
      $region61: #{tpu_custom_call.1} parent=5 // pred_check
        %p1908 = pneg %p1907
      $region62: #{tpu_custom_call.1} parent=5 // pred_check_branch
        %1910 = sbr.rel (%p1908) target = $region64
      $region63: #{tpu_custom_call.1} parent=5 // pred_region
        %s1911 = ssub.s32 %s18, 2
        // Predicated region
        $region65: #{tpu_custom_call.1} parent=63 // pred_check
          %p1912 = pneg %p241
        $region66: #{tpu_custom_call.1} parent=63 // pred_check_branch
          %1914 = sbr.rel (%p1912) target = $region68
        $region67: #{tpu_custom_call.1} parent=63 // pred_region
          %s1915 = sand.u32 %s226, 1
          %s1916 = scalar_lea.sflag [#allocation3], %s1915
          %s1917 = sand.u32 %s226, 1
          %s1918 = smul.addr %s1917, 8
          %s1919 = scalar_lea.vmem [#allocation2], %s1918
          %1920 = dma.done %s1916, 128
        $region68: #{tpu_custom_call.1} parent=63 // pred_fallthru
          _
      $region64: #{tpu_custom_call.1} parent=5 // pred_fallthru
        _
    $region6: #{tpu_custom_call.1} parent=1 // loop_footer
      %s22 = sadd.s32 1, %s18
    $region7: #{tpu_custom_call.1} parent=1 // loop_footer_branch
      %17 = sbr.rel target = $region3
    $region8: #{tpu_custom_call.1} parent=1 // loop_exit
      _
    %1921 = vsyncpa [#allocation3], 1
    %s1922 = scalar_lea.sflag [#allocation3], 1
    %1923 = vsyncpa %s1922, 1

</llo_original>
